<compile_context>
chip_gen: v7x
topology: tpu7x:2x2x1
jax: 0.10.0
libtpu: 0.0.40
codegen_flags: <defaults>
</compile_context>

<pallas_src>
import functools

import numpy as np
import jax
import jax.numpy as jnp
from jax.experimental import pallas as pl
from jax.experimental.pallas import tpu as pltpu


# ----------------------------------------------------------------------------
# Helpers
# ----------------------------------------------------------------------------
def _r8(n):
    return ((n + 7) // 8) * 8


def _slab_offsets(d_in, h):
    """Sublane-aligned row offsets of each piece inside the fused gate slab."""
    o_ewx = 0
    o_ewh = o_ewx + _r8(d_in)
    o_eb = o_ewh + _r8(h)
    o_dwx = o_eb + 8
    o_dwh = o_dwx + _r8(h)
    o_db = o_dwh + _r8(h)
    total = o_db + 8
    return o_ewx, o_ewh, o_eb, o_dwx, o_dwh, o_db, total


# ----------------------------------------------------------------------------
# Kernel
# ----------------------------------------------------------------------------
def seq2seq_kernel(x_ref,       # (T*Bp, D_in)           time-major, batch-padded
                   gate_ref,    # (rows, 4H)             fused gate-parameter slab
                   lin_ref,     # (r8(L*H)+8, L*D_out)   block-diag Linear W + tiled bias
                   out_ref,     # (Bp, L*D_out)          batch-major, lane-dense
                   *, b_pad, d_in, hidden, seq_in, seq_out, d_out, offs, off_lb):
    Bp, H, T, L = b_pad, hidden, seq_in, seq_out
    o_ewx, o_ewh, o_eb, o_dwx, o_dwh, o_db = offs

    # Static, sublane-aligned views into the fused slabs (single DMA each).
    ewx = gate_ref[o_ewx:o_ewx + d_in, :]          # (D_in, 4H)
    ewh = gate_ref[o_ewh:o_ewh + H, :]             # (H, 4H)
    eb = gate_ref[o_eb:o_eb + 1, :]                # (1, 4H)
    dwx = gate_ref[o_dwx:o_dwx + H, :]             # (H, 4H)
    dwh = gate_ref[o_dwh:o_dwh + H, :]             # (H, 4H)
    db = gate_ref[o_db:o_db + 1, :]                # (1, 4H)
    lw = lin_ref[0:L * H, :]                       # (L*H, L*D_out) block-diagonal
    lb = lin_ref[off_lb:off_lb + 1, :]             # (1, L*D_out)

    def step(g, c):
        # 2 EUP pushes per step (full 128-lane sigmoid + tanh), then 32-lane
        # chunk extraction; gate order along lanes is [i | f | o | c].
        sig = jax.nn.sigmoid(g)
        th = jnp.tanh(g)
        i_t = sig[:, 0:H]
        f_t = sig[:, H:2 * H]
        o_t = sig[:, 2 * H:3 * H]
        g_t = th[:, 3 * H:4 * H]
        c_new = f_t * c + i_t * g_t
        h_new = o_t * jnp.tanh(c_new)
        return h_new, c_new

    zeros = jnp.zeros((Bp, H), jnp.float32)

    # ---------------- Encoder ----------------
    # x-path has no recurrent dependency: one (T*Bp, D_in) x (D_in, 4H) matmul.
    xg_all = (jnp.dot(x_ref[...], ewx, preferred_element_type=jnp.float32)
              + eb)                                            # (T*Bp, 4H)

    h, c = zeros, zeros
    for t in range(T):                                         # static -> full unroll
        g = xg_all[t * Bp:(t + 1) * Bp, :] + jnp.dot(
            h, ewh, preferred_element_type=jnp.float32)
        h, c = step(g, c)
    h_enc = h

    # ---------------- Decoder ----------------
    # Decoder input is h_enc every step -> x-path matmul is loop-invariant.
    xg_dec = (jnp.dot(h_enc, dwx, preferred_element_type=jnp.float32)
              + db)                                            # (Bp, 4H)

    hd, cd = zeros, zeros
    hs_list = []
    for _ in range(L):                                         # static -> full unroll
        g = xg_dec + jnp.dot(hd, dwh, preferred_element_type=jnp.float32)
        hd, cd = step(g, cd)
        hs_list.append(hd)

    # Lane-concatenate decoder states: (Bp, L*H).
    hs = jnp.concatenate(hs_list, axis=1)

    # ---------------- Output Linear + ReLU ----------------
    # One block-diagonal matmul -> batch-major (Bp, L*D_out) lane-dense store.
    y = jnp.dot(hs, lw, preferred_element_type=jnp.float32) + lb
    out_ref[...] = jnp.maximum(y, 0.0)


# ----------------------------------------------------------------------------
# Wrapper (jitted)
# ----------------------------------------------------------------------------
@functools.partial(jax.jit, static_argnames=("expected_seq_len",))
def seq2seq_forward(x, packed, expected_seq_len=5):
    """x: (B, T, D_in) f32, packed = pack_params(...) -> (B, L, D_out) f32."""
    gate_slab = packed["gate_slab"]
    lin_slab = packed["lin_slab"]

    B, T, D_in = x.shape
    H = gate_slab.shape[1] // 4
    L = expected_seq_len
    D_out = lin_slab.shape[1] // L

    # Pad batch (sublane dim) to a multiple of 8; padded rows are independent
    # and sliced off afterwards. Time-major flatten for the hoisted x-path matmul.
    B_pad = _r8(B)
    x_tm = jnp.transpose(x, (1, 0, 2))                          # (T, B, D_in)
    if B_pad != B:
        x_tm = jnp.pad(x_tm, ((0, 0), (0, B_pad - B), (0, 0)))
    x2d = x_tm.reshape(T * B_pad, D_in)                         # (T*Bp, D_in)

    o_ewx, o_ewh, o_eb, o_dwx, o_dwh, o_db, _ = _slab_offsets(D_in, H)
    off_lb = _r8(L * H)

    flops = 2 * (T * B_pad * D_in * 4 * H          # encoder x-path
                 + T * B_pad * H * 4 * H           # encoder h-path
                 + B_pad * H * 4 * H               # decoder x-path (once)
                 + L * B_pad * H * 4 * H           # decoder h-path
                 + B_pad * (L * H) * (L * D_out))  # block-diag output matmul
    transcendentals = (T + L) * B_pad * (2 * 4 * H + H)
    bytes_accessed = 4 * (x2d.size + gate_slab.size + lin_slab.size
                          + B_pad * L * D_out)
    cost = pl.CostEstimate(flops=int(flops),
                           transcendentals=int(transcendentals),
                           bytes_accessed=int(bytes_accessed))

    vmem = pl.BlockSpec(memory_space=pltpu.MemorySpace.VMEM)
    out2d = pl.pallas_call(
        functools.partial(
            seq2seq_kernel,
            b_pad=B_pad, d_in=D_in, hidden=H, seq_in=T, seq_out=L, d_out=D_out,
            offs=(o_ewx, o_ewh, o_eb, o_dwx, o_dwh, o_db), off_lb=off_lb),
        out_shape=jax.ShapeDtypeStruct((B_pad, L * D_out), jnp.float32),
        in_specs=[vmem, vmem, vmem],
        out_specs=vmem,
        cost_estimate=cost,
    )(x2d, gate_slab, lin_slab)

    # Batch-major output: no transpose needed, just slice + reshape.
    return out2d[:B].reshape(B, L, D_out)


# ----------------------------------------------------------------------------
# Parameter packing: 9 arrays -> 2 slabs (3 kernel inputs total with x)
# ----------------------------------------------------------------------------
def pack_params(p, expected_seq_len=5):
    D_in, H4 = p["enc_wx"].shape
    H = H4 // 4
    D_out = p["lin_w"].shape[1]
    L = expected_seq_len

    def pad_rows(a):
        r = _r8(a.shape[0]) - a.shape[0]
        return jnp.pad(a, ((0, r), (0, 0))) if r else a

    gate_slab = jnp.concatenate([
        pad_rows(p["enc_wx"]), pad_rows(p["enc_wh"]), pad_rows(p["enc_b"]),
        pad_rows(p["dec_wx"]), pad_rows(p["dec_wh"]), pad_rows(p["dec_b"]),
    ], axis=0)                                                  # (rows, 4H)

    # Block-diagonal Linear weight: hs (Bp, L*H) @ W_bd (L*H, L*D_out) computes
    # every decoder step's Linear in one matmul, directly batch-major.
    lw_bd = jnp.zeros((L * H, L * D_out), jnp.float32)
    for l in range(L):
        lw_bd = lw_bd.at[l * H:(l + 1) * H, l * D_out:(l + 1) * D_out].set(p["lin_w"])
    lb_tiled = jnp.tile(p["lin_b"], (1, L))                     # (1, L*D_out)
    lin_slab = jnp.concatenate([pad_rows(lw_bd), pad_rows(lb_tiled)], axis=0)

    return {"gate_slab": gate_slab, "lin_slab": lin_slab}


# ----------------------------------------------------------------------------
# Deterministic parameter init (matches PyTorch Linear init, fused layout)
# ----------------------------------------------------------------------------
def init_params(key, input_dim, hidden_dim):
    def linear(k, fan_in, fan_out):
        k1, k2 = jax.random.split(k)
        bound = 1.0 / np.sqrt(fan_in)
        w = jax.random.uniform(k1, (fan_in, fan_out), jnp.float32, -bound, bound)
        b = jax.random.uniform(k2, (fan_out,), jnp.float32, -bound, bound)
        return w, b

    keys = jax.random.split(key, 17)
    ki = iter(range(17))

    # per-gate Linears in order (i, f, o, c)
    enc_x = [linear(keys[next(ki)], input_dim, hidden_dim) for _ in range(4)]
    enc_h = [linear(keys[next(ki)], hidden_dim, hidden_dim) for _ in range(4)]
    dec_x = [linear(keys[next(ki)], hidden_dim, hidden_dim) for _ in range(4)]
    dec_h = [linear(keys[next(ki)], hidden_dim, hidden_dim) for _ in range(4)]
    lin_w, lin_b = linear(keys[next(ki)], hidden_dim, input_dim)

    def fuse_w(ls):                       # 4 x (fan_in, H) -> (fan_in, 4H)
        return jnp.concatenate([w for w, _ in ls], axis=1)

    def fuse_b(xs, hs):                   # (bx + bh) per gate -> (1, 4H)
        return jnp.concatenate(
            [bx + bh for (_, bx), (_, bh) in zip(xs, hs)], axis=0).reshape(1, -1)

    return {
        "enc_wx": fuse_w(enc_x), "enc_wh": fuse_w(enc_h), "enc_b": fuse_b(enc_x, enc_h),
        "dec_wx": fuse_w(dec_x), "dec_wh": fuse_w(dec_h), "dec_b": fuse_b(dec_x, dec_h),
        "lin_w": lin_w, "lin_b": lin_b.reshape(1, -1),
    }


# ----------------------------------------------------------------------------
# Pure-JAX reference (mirrors the PyTorch forward exactly, with fused weights)
# ----------------------------------------------------------------------------
def seq2seq_ref(x, p, expected_seq_len=5):
    H = p["enc_wh"].shape[0]

    def cell(x_t, h, c, wx, wh, b):
        g = x_t @ wx + h @ wh + b
        i_t = jax.nn.sigmoid(g[:, 0:H])
        f_t = jax.nn.sigmoid(g[:, H:2 * H])
        o_t = jax.nn.sigmoid(g[:, 2 * H:3 * H])
        g_t = jnp.tanh(g[:, 3 * H:4 * H])
        c = f_t * c + i_t * g_t
        h = o_t * jnp.tanh(c)
        return h, c

    B = x.shape[0]
    h = jnp.zeros((B, H), jnp.float32)
    c = jnp.zeros((B, H), jnp.float32)
    for t in range(x.shape[1]):
        h, c = cell(x[:, t, :], h, c, p["enc_wx"], p["enc_wh"], p["enc_b"])
    h_enc = h

    hd = jnp.zeros((B, H), jnp.float32)
    cd = jnp.zeros((B, H), jnp.float32)
    outs = []
    for _ in range(expected_seq_len):
        hd, cd = cell(h_enc, hd, cd, p["dec_wx"], p["dec_wh"], p["dec_b"])
        outs.append(hd)
    o = jnp.stack(outs, axis=1)                               # (B, L, H)
    return jnp.maximum(o @ p["lin_w"] + p["lin_b"], 0.0)


# ----------------------------------------------------------------------------
if __name__ == "__main__":
    B, T, D_IN, HID, L = 4, 8, 8, 32, 5

    key = jax.random.PRNGKey(0)
    k_x, k_p = jax.random.split(key)
    x = jax.random.normal(k_x, (B, T, D_IN), dtype=jnp.float32)
    params = init_params(k_p, D_IN, HID)
    packed = pack_params(params, expected_seq_len=L)

    out = jax.block_until_ready(seq2seq_forward(x, packed, expected_seq_len=L))
    ref = jax.block_until_ready(seq2seq_ref(x, params, expected_seq_len=L))

    assert out.shape == (B, L, D_IN), out.shape
    err = float(np.max(np.abs(np.asarray(out) - np.asarray(ref))))
    assert np.allclose(np.asarray(out), np.asarray(ref), rtol=1e-5, atol=1e-5), err

    print("KERNEL_OK")
</pallas_src>

<mosaic_0001>
module attributes {stable_mosaic.version = 11 : i64} {
  func.func @seq2seq_kernel(%arg0: memref<64x8xf32, #tpu.memory_space<vmem>>, %arg1: memref<120x128xf32, #tpu.memory_space<vmem>>, %arg2: memref<168x40xf32, #tpu.memory_space<vmem>>, %arg3: memref<8x40xf32, #tpu.memory_space<vmem>>) attributes {dimension_semantics = [], scalar_prefetch = 0 : i64, scratch_operands = 0 : i64, tpu.core_type = #tpu.core_type<tc>} {
    %c0 = arith.constant 0 : index
    %c0_0 = arith.constant 0 : index
    %0 = vector.load %arg1[%c0, %c0_0] : memref<120x128xf32, #tpu.memory_space<vmem>>, vector<8x128xf32>
    %c8 = arith.constant 8 : index
    %c0_1 = arith.constant 0 : index
    %1 = vector.load %arg1[%c8, %c0_1] : memref<120x128xf32, #tpu.memory_space<vmem>>, vector<32x128xf32>
    %c40 = arith.constant 40 : index
    %c0_2 = arith.constant 0 : index
    %2 = vector.load %arg1[%c40, %c0_2] : memref<120x128xf32, #tpu.memory_space<vmem>>, vector<1x128xf32>
    %c48 = arith.constant 48 : index
    %c0_3 = arith.constant 0 : index
    %3 = vector.load %arg1[%c48, %c0_3] : memref<120x128xf32, #tpu.memory_space<vmem>>, vector<32x128xf32>
    %c80 = arith.constant 80 : index
    %c0_4 = arith.constant 0 : index
    %4 = vector.load %arg1[%c80, %c0_4] : memref<120x128xf32, #tpu.memory_space<vmem>>, vector<32x128xf32>
    %c112 = arith.constant 112 : index
    %c0_5 = arith.constant 0 : index
    %5 = vector.load %arg1[%c112, %c0_5] : memref<120x128xf32, #tpu.memory_space<vmem>>, vector<1x128xf32>
    %c0_6 = arith.constant 0 : index
    %c0_7 = arith.constant 0 : index
    %6 = vector.load %arg2[%c0_6, %c0_7] : memref<168x40xf32, #tpu.memory_space<vmem>>, vector<160x40xf32>
    %c160 = arith.constant 160 : index
    %c0_8 = arith.constant 0 : index
    %7 = vector.load %arg2[%c160, %c0_8] : memref<168x40xf32, #tpu.memory_space<vmem>>, vector<1x40xf32>
    %cst = arith.constant 0.000000e+00 : f32
    %8 = vector.broadcast %cst : f32 to vector<8x32xf32>
    %c0_9 = arith.constant 0 : index
    %c0_10 = arith.constant 0 : index
    %9 = vector.load %arg0[%c0_9, %c0_10] : memref<64x8xf32, #tpu.memory_space<vmem>>, vector<64x8xf32>
    %cst_11 = arith.constant dense<0.000000e+00> : vector<64x128xf32>
    %10 = tpu.matmul %9, %0, %cst_11 {dimension_numbers = #tpu.dot_dimension_numbers<[1], [0], [0], [1], [0, 0, 1, 1], [], []>} : vector<64x8xf32>, vector<8x128xf32>, vector<64x128xf32> -> vector<64x128xf32>
    %11 = vector.broadcast %2 : vector<1x128xf32> to vector<64x128xf32>
    %12 = arith.addf %10, %11 : vector<64x128xf32>
    %13 = vector.extract_strided_slice %12 {offsets = [0, 0], sizes = [8, 128], strides = [1, 1]} : vector<64x128xf32> to vector<8x128xf32>
    %cst_12 = arith.constant dense<0.000000e+00> : vector<8x128xf32>
    %14 = tpu.matmul %8, %1, %cst_12 {dimension_numbers = #tpu.dot_dimension_numbers<[1], [0], [0], [1], [0, 0, 1, 1], [], []>} : vector<8x32xf32>, vector<32x128xf32>, vector<8x128xf32> -> vector<8x128xf32>
    %15 = arith.addf %13, %14 : vector<8x128xf32>
    %16 = arith.negf %15 : vector<8x128xf32>
    %17 = math.exp %16 : vector<8x128xf32>
    %cst_13 = arith.constant 1.000000e+00 : f32
    %18 = vector.broadcast %cst_13 : f32 to vector<8x128xf32>
    %19 = arith.addf %18, %17 : vector<8x128xf32>
    %20 = arith.divf %18, %19 : vector<8x128xf32>
    %21 = math.tanh %15 : vector<8x128xf32>
    %22 = vector.extract_strided_slice %20 {offsets = [0, 0], sizes = [8, 32], strides = [1, 1]} : vector<8x128xf32> to vector<8x32xf32>
    %23 = vector.extract_strided_slice %20 {offsets = [0, 32], sizes = [8, 32], strides = [1, 1]} : vector<8x128xf32> to vector<8x32xf32>
    %24 = vector.extract_strided_slice %20 {offsets = [0, 64], sizes = [8, 32], strides = [1, 1]} : vector<8x128xf32> to vector<8x32xf32>
    %25 = vector.extract_strided_slice %21 {offsets = [0, 96], sizes = [8, 32], strides = [1, 1]} : vector<8x128xf32> to vector<8x32xf32>
    %26 = arith.mulf %23, %8 : vector<8x32xf32>
    %27 = arith.mulf %22, %25 : vector<8x32xf32>
    %28 = arith.addf %26, %27 : vector<8x32xf32>
    %29 = math.tanh %28 : vector<8x32xf32>
    %30 = arith.mulf %24, %29 : vector<8x32xf32>
    %31 = vector.extract_strided_slice %12 {offsets = [8, 0], sizes = [8, 128], strides = [1, 1]} : vector<64x128xf32> to vector<8x128xf32>
    %cst_14 = arith.constant dense<0.000000e+00> : vector<8x128xf32>
    %32 = tpu.matmul %30, %1, %cst_14 {dimension_numbers = #tpu.dot_dimension_numbers<[1], [0], [0], [1], [0, 0, 1, 1], [], []>} : vector<8x32xf32>, vector<32x128xf32>, vector<8x128xf32> -> vector<8x128xf32>
    %33 = arith.addf %31, %32 : vector<8x128xf32>
    %34 = arith.negf %33 : vector<8x128xf32>
    %35 = math.exp %34 : vector<8x128xf32>
    %cst_15 = arith.constant 1.000000e+00 : f32
    %36 = vector.broadcast %cst_15 : f32 to vector<8x128xf32>
    %37 = arith.addf %36, %35 : vector<8x128xf32>
    %38 = arith.divf %36, %37 : vector<8x128xf32>
    %39 = math.tanh %33 : vector<8x128xf32>
    %40 = vector.extract_strided_slice %38 {offsets = [0, 0], sizes = [8, 32], strides = [1, 1]} : vector<8x128xf32> to vector<8x32xf32>
    %41 = vector.extract_strided_slice %38 {offsets = [0, 32], sizes = [8, 32], strides = [1, 1]} : vector<8x128xf32> to vector<8x32xf32>
    %42 = vector.extract_strided_slice %38 {offsets = [0, 64], sizes = [8, 32], strides = [1, 1]} : vector<8x128xf32> to vector<8x32xf32>
    %43 = vector.extract_strided_slice %39 {offsets = [0, 96], sizes = [8, 32], strides = [1, 1]} : vector<8x128xf32> to vector<8x32xf32>
    %44 = arith.mulf %41, %28 : vector<8x32xf32>
    %45 = arith.mulf %40, %43 : vector<8x32xf32>
    %46 = arith.addf %44, %45 : vector<8x32xf32>
    %47 = math.tanh %46 : vector<8x32xf32>
    %48 = arith.mulf %42, %47 : vector<8x32xf32>
    %49 = vector.extract_strided_slice %12 {offsets = [16, 0], sizes = [8, 128], strides = [1, 1]} : vector<64x128xf32> to vector<8x128xf32>
    %cst_16 = arith.constant dense<0.000000e+00> : vector<8x128xf32>
    %50 = tpu.matmul %48, %1, %cst_16 {dimension_numbers = #tpu.dot_dimension_numbers<[1], [0], [0], [1], [0, 0, 1, 1], [], []>} : vector<8x32xf32>, vector<32x128xf32>, vector<8x128xf32> -> vector<8x128xf32>
    %51 = arith.addf %49, %50 : vector<8x128xf32>
    %52 = arith.negf %51 : vector<8x128xf32>
    %53 = math.exp %52 : vector<8x128xf32>
    %cst_17 = arith.constant 1.000000e+00 : f32
    %54 = vector.broadcast %cst_17 : f32 to vector<8x128xf32>
    %55 = arith.addf %54, %53 : vector<8x128xf32>
    %56 = arith.divf %54, %55 : vector<8x128xf32>
    %57 = math.tanh %51 : vector<8x128xf32>
    %58 = vector.extract_strided_slice %56 {offsets = [0, 0], sizes = [8, 32], strides = [1, 1]} : vector<8x128xf32> to vector<8x32xf32>
    %59 = vector.extract_strided_slice %56 {offsets = [0, 32], sizes = [8, 32], strides = [1, 1]} : vector<8x128xf32> to vector<8x32xf32>
    %60 = vector.extract_strided_slice %56 {offsets = [0, 64], sizes = [8, 32], strides = [1, 1]} : vector<8x128xf32> to vector<8x32xf32>
    %61 = vector.extract_strided_slice %57 {offsets = [0, 96], sizes = [8, 32], strides = [1, 1]} : vector<8x128xf32> to vector<8x32xf32>
    %62 = arith.mulf %59, %46 : vector<8x32xf32>
    %63 = arith.mulf %58, %61 : vector<8x32xf32>
    %64 = arith.addf %62, %63 : vector<8x32xf32>
    %65 = math.tanh %64 : vector<8x32xf32>
    %66 = arith.mulf %60, %65 : vector<8x32xf32>
    %67 = vector.extract_strided_slice %12 {offsets = [24, 0], sizes = [8, 128], strides = [1, 1]} : vector<64x128xf32> to vector<8x128xf32>
    %cst_18 = arith.constant dense<0.000000e+00> : vector<8x128xf32>
    %68 = tpu.matmul %66, %1, %cst_18 {dimension_numbers = #tpu.dot_dimension_numbers<[1], [0], [0], [1], [0, 0, 1, 1], [], []>} : vector<8x32xf32>, vector<32x128xf32>, vector<8x128xf32> -> vector<8x128xf32>
    %69 = arith.addf %67, %68 : vector<8x128xf32>
    %70 = arith.negf %69 : vector<8x128xf32>
    %71 = math.exp %70 : vector<8x128xf32>
    %cst_19 = arith.constant 1.000000e+00 : f32
    %72 = vector.broadcast %cst_19 : f32 to vector<8x128xf32>
    %73 = arith.addf %72, %71 : vector<8x128xf32>
    %74 = arith.divf %72, %73 : vector<8x128xf32>
    %75 = math.tanh %69 : vector<8x128xf32>
    %76 = vector.extract_strided_slice %74 {offsets = [0, 0], sizes = [8, 32], strides = [1, 1]} : vector<8x128xf32> to vector<8x32xf32>
    %77 = vector.extract_strided_slice %74 {offsets = [0, 32], sizes = [8, 32], strides = [1, 1]} : vector<8x128xf32> to vector<8x32xf32>
    %78 = vector.extract_strided_slice %74 {offsets = [0, 64], sizes = [8, 32], strides = [1, 1]} : vector<8x128xf32> to vector<8x32xf32>
    %79 = vector.extract_strided_slice %75 {offsets = [0, 96], sizes = [8, 32], strides = [1, 1]} : vector<8x128xf32> to vector<8x32xf32>
    %80 = arith.mulf %77, %64 : vector<8x32xf32>
    %81 = arith.mulf %76, %79 : vector<8x32xf32>
    %82 = arith.addf %80, %81 : vector<8x32xf32>
    %83 = math.tanh %82 : vector<8x32xf32>
    %84 = arith.mulf %78, %83 : vector<8x32xf32>
    %85 = vector.extract_strided_slice %12 {offsets = [32, 0], sizes = [8, 128], strides = [1, 1]} : vector<64x128xf32> to vector<8x128xf32>
    %cst_20 = arith.constant dense<0.000000e+00> : vector<8x128xf32>
    %86 = tpu.matmul %84, %1, %cst_20 {dimension_numbers = #tpu.dot_dimension_numbers<[1], [0], [0], [1], [0, 0, 1, 1], [], []>} : vector<8x32xf32>, vector<32x128xf32>, vector<8x128xf32> -> vector<8x128xf32>
    %87 = arith.addf %85, %86 : vector<8x128xf32>
    %88 = arith.negf %87 : vector<8x128xf32>
    %89 = math.exp %88 : vector<8x128xf32>
    %cst_21 = arith.constant 1.000000e+00 : f32
    %90 = vector.broadcast %cst_21 : f32 to vector<8x128xf32>
    %91 = arith.addf %90, %89 : vector<8x128xf32>
    %92 = arith.divf %90, %91 : vector<8x128xf32>
    %93 = math.tanh %87 : vector<8x128xf32>
    %94 = vector.extract_strided_slice %92 {offsets = [0, 0], sizes = [8, 32], strides = [1, 1]} : vector<8x128xf32> to vector<8x32xf32>
    %95 = vector.extract_strided_slice %92 {offsets = [0, 32], sizes = [8, 32], strides = [1, 1]} : vector<8x128xf32> to vector<8x32xf32>
    %96 = vector.extract_strided_slice %92 {offsets = [0, 64], sizes = [8, 32], strides = [1, 1]} : vector<8x128xf32> to vector<8x32xf32>
    %97 = vector.extract_strided_slice %93 {offsets = [0, 96], sizes = [8, 32], strides = [1, 1]} : vector<8x128xf32> to vector<8x32xf32>
    %98 = arith.mulf %95, %82 : vector<8x32xf32>
    %99 = arith.mulf %94, %97 : vector<8x32xf32>
    %100 = arith.addf %98, %99 : vector<8x32xf32>
    %101 = math.tanh %100 : vector<8x32xf32>
    %102 = arith.mulf %96, %101 : vector<8x32xf32>
    %103 = vector.extract_strided_slice %12 {offsets = [40, 0], sizes = [8, 128], strides = [1, 1]} : vector<64x128xf32> to vector<8x128xf32>
    %cst_22 = arith.constant dense<0.000000e+00> : vector<8x128xf32>
    %104 = tpu.matmul %102, %1, %cst_22 {dimension_numbers = #tpu.dot_dimension_numbers<[1], [0], [0], [1], [0, 0, 1, 1], [], []>} : vector<8x32xf32>, vector<32x128xf32>, vector<8x128xf32> -> vector<8x128xf32>
    %105 = arith.addf %103, %104 : vector<8x128xf32>
    %106 = arith.negf %105 : vector<8x128xf32>
    %107 = math.exp %106 : vector<8x128xf32>
    %cst_23 = arith.constant 1.000000e+00 : f32
    %108 = vector.broadcast %cst_23 : f32 to vector<8x128xf32>
    %109 = arith.addf %108, %107 : vector<8x128xf32>
    %110 = arith.divf %108, %109 : vector<8x128xf32>
    %111 = math.tanh %105 : vector<8x128xf32>
    %112 = vector.extract_strided_slice %110 {offsets = [0, 0], sizes = [8, 32], strides = [1, 1]} : vector<8x128xf32> to vector<8x32xf32>
    %113 = vector.extract_strided_slice %110 {offsets = [0, 32], sizes = [8, 32], strides = [1, 1]} : vector<8x128xf32> to vector<8x32xf32>
    %114 = vector.extract_strided_slice %110 {offsets = [0, 64], sizes = [8, 32], strides = [1, 1]} : vector<8x128xf32> to vector<8x32xf32>
    %115 = vector.extract_strided_slice %111 {offsets = [0, 96], sizes = [8, 32], strides = [1, 1]} : vector<8x128xf32> to vector<8x32xf32>
    %116 = arith.mulf %113, %100 : vector<8x32xf32>
    %117 = arith.mulf %112, %115 : vector<8x32xf32>
    %118 = arith.addf %116, %117 : vector<8x32xf32>
    %119 = math.tanh %118 : vector<8x32xf32>
    %120 = arith.mulf %114, %119 : vector<8x32xf32>
    %121 = vector.extract_strided_slice %12 {offsets = [48, 0], sizes = [8, 128], strides = [1, 1]} : vector<64x128xf32> to vector<8x128xf32>
    %cst_24 = arith.constant dense<0.000000e+00> : vector<8x128xf32>
    %122 = tpu.matmul %120, %1, %cst_24 {dimension_numbers = #tpu.dot_dimension_numbers<[1], [0], [0], [1], [0, 0, 1, 1], [], []>} : vector<8x32xf32>, vector<32x128xf32>, vector<8x128xf32> -> vector<8x128xf32>
    %123 = arith.addf %121, %122 : vector<8x128xf32>
    %124 = arith.negf %123 : vector<8x128xf32>
    %125 = math.exp %124 : vector<8x128xf32>
    %cst_25 = arith.constant 1.000000e+00 : f32
    %126 = vector.broadcast %cst_25 : f32 to vector<8x128xf32>
    %127 = arith.addf %126, %125 : vector<8x128xf32>
    %128 = arith.divf %126, %127 : vector<8x128xf32>
    %129 = math.tanh %123 : vector<8x128xf32>
    %130 = vector.extract_strided_slice %128 {offsets = [0, 0], sizes = [8, 32], strides = [1, 1]} : vector<8x128xf32> to vector<8x32xf32>
    %131 = vector.extract_strided_slice %128 {offsets = [0, 32], sizes = [8, 32], strides = [1, 1]} : vector<8x128xf32> to vector<8x32xf32>
    %132 = vector.extract_strided_slice %128 {offsets = [0, 64], sizes = [8, 32], strides = [1, 1]} : vector<8x128xf32> to vector<8x32xf32>
    %133 = vector.extract_strided_slice %129 {offsets = [0, 96], sizes = [8, 32], strides = [1, 1]} : vector<8x128xf32> to vector<8x32xf32>
    %134 = arith.mulf %131, %118 : vector<8x32xf32>
    %135 = arith.mulf %130, %133 : vector<8x32xf32>
    %136 = arith.addf %134, %135 : vector<8x32xf32>
    %137 = math.tanh %136 : vector<8x32xf32>
    %138 = arith.mulf %132, %137 : vector<8x32xf32>
    %139 = vector.extract_strided_slice %12 {offsets = [56, 0], sizes = [8, 128], strides = [1, 1]} : vector<64x128xf32> to vector<8x128xf32>
    %cst_26 = arith.constant dense<0.000000e+00> : vector<8x128xf32>
    %140 = tpu.matmul %138, %1, %cst_26 {dimension_numbers = #tpu.dot_dimension_numbers<[1], [0], [0], [1], [0, 0, 1, 1], [], []>} : vector<8x32xf32>, vector<32x128xf32>, vector<8x128xf32> -> vector<8x128xf32>
    %141 = arith.addf %139, %140 : vector<8x128xf32>
    %142 = arith.negf %141 : vector<8x128xf32>
    %143 = math.exp %142 : vector<8x128xf32>
    %cst_27 = arith.constant 1.000000e+00 : f32
    %144 = vector.broadcast %cst_27 : f32 to vector<8x128xf32>
    %145 = arith.addf %144, %143 : vector<8x128xf32>
    %146 = arith.divf %144, %145 : vector<8x128xf32>
    %147 = math.tanh %141 : vector<8x128xf32>
    %148 = vector.extract_strided_slice %146 {offsets = [0, 0], sizes = [8, 32], strides = [1, 1]} : vector<8x128xf32> to vector<8x32xf32>
    %149 = vector.extract_strided_slice %146 {offsets = [0, 32], sizes = [8, 32], strides = [1, 1]} : vector<8x128xf32> to vector<8x32xf32>
    %150 = vector.extract_strided_slice %146 {offsets = [0, 64], sizes = [8, 32], strides = [1, 1]} : vector<8x128xf32> to vector<8x32xf32>
    %151 = vector.extract_strided_slice %147 {offsets = [0, 96], sizes = [8, 32], strides = [1, 1]} : vector<8x128xf32> to vector<8x32xf32>
    %152 = arith.mulf %149, %136 : vector<8x32xf32>
    %153 = arith.mulf %148, %151 : vector<8x32xf32>
    %154 = arith.addf %152, %153 : vector<8x32xf32>
    %155 = math.tanh %154 : vector<8x32xf32>
    %156 = arith.mulf %150, %155 : vector<8x32xf32>
    %cst_28 = arith.constant dense<0.000000e+00> : vector<8x128xf32>
    %157 = tpu.matmul %156, %3, %cst_28 {dimension_numbers = #tpu.dot_dimension_numbers<[1], [0], [0], [1], [0, 0, 1, 1], [], []>} : vector<8x32xf32>, vector<32x128xf32>, vector<8x128xf32> -> vector<8x128xf32>
    %158 = vector.broadcast %5 : vector<1x128xf32> to vector<8x128xf32>
    %159 = arith.addf %157, %158 : vector<8x128xf32>
    %cst_29 = arith.constant dense<0.000000e+00> : vector<8x128xf32>
    %160 = tpu.matmul %8, %4, %cst_29 {dimension_numbers = #tpu.dot_dimension_numbers<[1], [0], [0], [1], [0, 0, 1, 1], [], []>} : vector<8x32xf32>, vector<32x128xf32>, vector<8x128xf32> -> vector<8x128xf32>
    %161 = arith.addf %159, %160 : vector<8x128xf32>
    %162 = arith.negf %161 : vector<8x128xf32>
    %163 = math.exp %162 : vector<8x128xf32>
    %cst_30 = arith.constant 1.000000e+00 : f32
    %164 = vector.broadcast %cst_30 : f32 to vector<8x128xf32>
    %165 = arith.addf %164, %163 : vector<8x128xf32>
    %166 = arith.divf %164, %165 : vector<8x128xf32>
    %167 = math.tanh %161 : vector<8x128xf32>
    %168 = vector.extract_strided_slice %166 {offsets = [0, 0], sizes = [8, 32], strides = [1, 1]} : vector<8x128xf32> to vector<8x32xf32>
    %169 = vector.extract_strided_slice %166 {offsets = [0, 32], sizes = [8, 32], strides = [1, 1]} : vector<8x128xf32> to vector<8x32xf32>
    %170 = vector.extract_strided_slice %166 {offsets = [0, 64], sizes = [8, 32], strides = [1, 1]} : vector<8x128xf32> to vector<8x32xf32>
    %171 = vector.extract_strided_slice %167 {offsets = [0, 96], sizes = [8, 32], strides = [1, 1]} : vector<8x128xf32> to vector<8x32xf32>
    %172 = arith.mulf %169, %8 : vector<8x32xf32>
    %173 = arith.mulf %168, %171 : vector<8x32xf32>
    %174 = arith.addf %172, %173 : vector<8x32xf32>
    %175 = math.tanh %174 : vector<8x32xf32>
    %176 = arith.mulf %170, %175 : vector<8x32xf32>
    %cst_31 = arith.constant dense<0.000000e+00> : vector<8x128xf32>
    %177 = tpu.matmul %176, %4, %cst_31 {dimension_numbers = #tpu.dot_dimension_numbers<[1], [0], [0], [1], [0, 0, 1, 1], [], []>} : vector<8x32xf32>, vector<32x128xf32>, vector<8x128xf32> -> vector<8x128xf32>
    %178 = arith.addf %159, %177 : vector<8x128xf32>
    %179 = arith.negf %178 : vector<8x128xf32>
    %180 = math.exp %179 : vector<8x128xf32>
    %cst_32 = arith.constant 1.000000e+00 : f32
    %181 = vector.broadcast %cst_32 : f32 to vector<8x128xf32>
    %182 = arith.addf %181, %180 : vector<8x128xf32>
    %183 = arith.divf %181, %182 : vector<8x128xf32>
    %184 = math.tanh %178 : vector<8x128xf32>
    %185 = vector.extract_strided_slice %183 {offsets = [0, 0], sizes = [8, 32], strides = [1, 1]} : vector<8x128xf32> to vector<8x32xf32>
    %186 = vector.extract_strided_slice %183 {offsets = [0, 32], sizes = [8, 32], strides = [1, 1]} : vector<8x128xf32> to vector<8x32xf32>
    %187 = vector.extract_strided_slice %183 {offsets = [0, 64], sizes = [8, 32], strides = [1, 1]} : vector<8x128xf32> to vector<8x32xf32>
    %188 = vector.extract_strided_slice %184 {offsets = [0, 96], sizes = [8, 32], strides = [1, 1]} : vector<8x128xf32> to vector<8x32xf32>
    %189 = arith.mulf %186, %174 : vector<8x32xf32>
    %190 = arith.mulf %185, %188 : vector<8x32xf32>
    %191 = arith.addf %189, %190 : vector<8x32xf32>
    %192 = math.tanh %191 : vector<8x32xf32>
    %193 = arith.mulf %187, %192 : vector<8x32xf32>
    %cst_33 = arith.constant dense<0.000000e+00> : vector<8x128xf32>
    %194 = tpu.matmul %193, %4, %cst_33 {dimension_numbers = #tpu.dot_dimension_numbers<[1], [0], [0], [1], [0, 0, 1, 1], [], []>} : vector<8x32xf32>, vector<32x128xf32>, vector<8x128xf32> -> vector<8x128xf32>
    %195 = arith.addf %159, %194 : vector<8x128xf32>
    %196 = arith.negf %195 : vector<8x128xf32>
    %197 = math.exp %196 : vector<8x128xf32>
    %cst_34 = arith.constant 1.000000e+00 : f32
    %198 = vector.broadcast %cst_34 : f32 to vector<8x128xf32>
    %199 = arith.addf %198, %197 : vector<8x128xf32>
    %200 = arith.divf %198, %199 : vector<8x128xf32>
    %201 = math.tanh %195 : vector<8x128xf32>
    %202 = vector.extract_strided_slice %200 {offsets = [0, 0], sizes = [8, 32], strides = [1, 1]} : vector<8x128xf32> to vector<8x32xf32>
    %203 = vector.extract_strided_slice %200 {offsets = [0, 32], sizes = [8, 32], strides = [1, 1]} : vector<8x128xf32> to vector<8x32xf32>
    %204 = vector.extract_strided_slice %200 {offsets = [0, 64], sizes = [8, 32], strides = [1, 1]} : vector<8x128xf32> to vector<8x32xf32>
    %205 = vector.extract_strided_slice %201 {offsets = [0, 96], sizes = [8, 32], strides = [1, 1]} : vector<8x128xf32> to vector<8x32xf32>
    %206 = arith.mulf %203, %191 : vector<8x32xf32>
    %207 = arith.mulf %202, %205 : vector<8x32xf32>
    %208 = arith.addf %206, %207 : vector<8x32xf32>
    %209 = math.tanh %208 : vector<8x32xf32>
    %210 = arith.mulf %204, %209 : vector<8x32xf32>
    %cst_35 = arith.constant dense<0.000000e+00> : vector<8x128xf32>
    %211 = tpu.matmul %210, %4, %cst_35 {dimension_numbers = #tpu.dot_dimension_numbers<[1], [0], [0], [1], [0, 0, 1, 1], [], []>} : vector<8x32xf32>, vector<32x128xf32>, vector<8x128xf32> -> vector<8x128xf32>
    %212 = arith.addf %159, %211 : vector<8x128xf32>
    %213 = arith.negf %212 : vector<8x128xf32>
    %214 = math.exp %213 : vector<8x128xf32>
    %cst_36 = arith.constant 1.000000e+00 : f32
    %215 = vector.broadcast %cst_36 : f32 to vector<8x128xf32>
    %216 = arith.addf %215, %214 : vector<8x128xf32>
    %217 = arith.divf %215, %216 : vector<8x128xf32>
    %218 = math.tanh %212 : vector<8x128xf32>
    %219 = vector.extract_strided_slice %217 {offsets = [0, 0], sizes = [8, 32], strides = [1, 1]} : vector<8x128xf32> to vector<8x32xf32>
    %220 = vector.extract_strided_slice %217 {offsets = [0, 32], sizes = [8, 32], strides = [1, 1]} : vector<8x128xf32> to vector<8x32xf32>
    %221 = vector.extract_strided_slice %217 {offsets = [0, 64], sizes = [8, 32], strides = [1, 1]} : vector<8x128xf32> to vector<8x32xf32>
    %222 = vector.extract_strided_slice %218 {offsets = [0, 96], sizes = [8, 32], strides = [1, 1]} : vector<8x128xf32> to vector<8x32xf32>
    %223 = arith.mulf %220, %208 : vector<8x32xf32>
    %224 = arith.mulf %219, %222 : vector<8x32xf32>
    %225 = arith.addf %223, %224 : vector<8x32xf32>
    %226 = math.tanh %225 : vector<8x32xf32>
    %227 = arith.mulf %221, %226 : vector<8x32xf32>
    %cst_37 = arith.constant dense<0.000000e+00> : vector<8x128xf32>
    %228 = tpu.matmul %227, %4, %cst_37 {dimension_numbers = #tpu.dot_dimension_numbers<[1], [0], [0], [1], [0, 0, 1, 1], [], []>} : vector<8x32xf32>, vector<32x128xf32>, vector<8x128xf32> -> vector<8x128xf32>
    %229 = arith.addf %159, %228 : vector<8x128xf32>
    %230 = arith.negf %229 : vector<8x128xf32>
    %231 = math.exp %230 : vector<8x128xf32>
    %cst_38 = arith.constant 1.000000e+00 : f32
    %232 = vector.broadcast %cst_38 : f32 to vector<8x128xf32>
    %233 = arith.addf %232, %231 : vector<8x128xf32>
    %234 = arith.divf %232, %233 : vector<8x128xf32>
    %235 = math.tanh %229 : vector<8x128xf32>
    %236 = vector.extract_strided_slice %234 {offsets = [0, 0], sizes = [8, 32], strides = [1, 1]} : vector<8x128xf32> to vector<8x32xf32>
    %237 = vector.extract_strided_slice %234 {offsets = [0, 32], sizes = [8, 32], strides = [1, 1]} : vector<8x128xf32> to vector<8x32xf32>
    %238 = vector.extract_strided_slice %234 {offsets = [0, 64], sizes = [8, 32], strides = [1, 1]} : vector<8x128xf32> to vector<8x32xf32>
    %239 = vector.extract_strided_slice %235 {offsets = [0, 96], sizes = [8, 32], strides = [1, 1]} : vector<8x128xf32> to vector<8x32xf32>
    %240 = arith.mulf %237, %225 : vector<8x32xf32>
    %241 = arith.mulf %236, %239 : vector<8x32xf32>
    %242 = arith.addf %240, %241 : vector<8x32xf32>
    %243 = math.tanh %242 : vector<8x32xf32>
    %244 = arith.mulf %238, %243 : vector<8x32xf32>
    %245 = tpu.concatenate %176, %193, %210, %227, %244 in 1 : vector<8x32xf32>, vector<8x32xf32>, vector<8x32xf32>, vector<8x32xf32>, vector<8x32xf32> -> vector<8x160xf32>
    %cst_39 = arith.constant dense<0.000000e+00> : vector<8x40xf32>
    %246 = tpu.matmul %245, %6, %cst_39 {dimension_numbers = #tpu.dot_dimension_numbers<[1], [0], [0], [1], [0, 0, 1, 1], [], []>} : vector<8x160xf32>, vector<160x40xf32>, vector<8x40xf32> -> vector<8x40xf32>
    %247 = vector.broadcast %7 : vector<1x40xf32> to vector<8x40xf32>
    %248 = arith.addf %246, %247 : vector<8x40xf32>
    %cst_40 = arith.constant 0.000000e+00 : f32
    %249 = vector.broadcast %cst_40 : f32 to vector<8x40xf32>
    %250 = arith.maximumf %248, %249 : vector<8x40xf32>
    %c0_41 = arith.constant 0 : index
    %c0_42 = arith.constant 0 : index
    %251 = vector.load %arg3[%c0_41, %c0_42] : memref<8x40xf32, #tpu.memory_space<vmem>>, vector<8x40xf32>
    tpu.vector_store %arg3[%c0_41, %c0_42], %250 {strides = array<i32>} : memref<8x40xf32, #tpu.memory_space<vmem>>, vector<8x40xf32>,
    return
  }
}

</mosaic_0001>

<llo_original>
// kernel: seq2seq_forward.1
$region0: #{seq2seq_forward.1}
  #allocation0 [shape = 'u32[]', space=smem, size = 0x4, offset = 0x4, fixed_abs, tag = 'smem constant byte address 0x4 - core index']
  #allocation1 [shape = 'u32[144,128]{1,0:T(1,128)}', space=vmem, size = 0x12000, scoped, tag = 'internal scratch']
  %s0 = inlined_call_operand.vmem [shape: f32[64,8], index: 0, kind: input, shape index: {}]
  %s1 = inlined_call_operand.vmem [shape: f32[120,128], index: 1, kind: input, shape index: {}]
  %s2 = inlined_call_operand.vmem [shape: f32[168,40], index: 2, kind: input, shape index: {}]
  %s3 = inlined_call_operand.vmem [shape: f32[8,40], index: 3, kind: output, shape index: {}]
  %s4 = sld [smem:[#allocation0]]
  $region22: #{seq2seq_forward.1} parent=0
    _
  %s6 = ssub.s32 1, %s4
  %s7 = scalar_select 0, %s6, %s4
  // Predicated region
  $region2: #{seq2seq_forward.1} parent=0 // pred_check
    _
  $region3: #{seq2seq_forward.1} parent=0 // pred_check_branch
    %9 = sbr.rel (0) target = $region5
  $region4: #{seq2seq_forward.1} parent=0 // pred_region
    _
  $region5: #{seq2seq_forward.1} parent=0 // pred_fallthru
    _
  // Predicated region
  $region6: #{seq2seq_forward.1} parent=0 // pred_check
    _
  $region7: #{seq2seq_forward.1} parent=0 // pred_check_branch
    %11 = sbr.rel (0) target = $region9
  $region8: #{seq2seq_forward.1} parent=0 // pred_region
    _
  $region9: #{seq2seq_forward.1} parent=0 // pred_fallthru
    _
  // Predicated region
  $region10: #{seq2seq_forward.1} parent=0 // pred_check
    _
  $region11: #{seq2seq_forward.1} parent=0 // pred_check_branch
    %13 = sbr.rel (0) target = $region13
  $region12: #{seq2seq_forward.1} parent=0 // pred_region
    _
  $region13: #{seq2seq_forward.1} parent=0 // pred_fallthru
    _
  %v14 = vld [vmem:[%s1] sm:$0xff]
  %v15 = vld [vmem:[%s1 + $0x8] sm:$0xff]
  %v16 = vld [vmem:[%s1 + $0x10] sm:$0xff]
  %v17 = vld [vmem:[%s1 + $0x18] sm:$0xff]
  %v18 = vld [vmem:[%s1 + $0x20] sm:$0xff]
  %v19 = vld [vmem:[%s1 + $0x28] sm:$0x1]
  %v20 = vld [vmem:[%s1 + $0x30] sm:$0xff]
  %v21 = vld [vmem:[%s1 + $0x38] sm:$0xff]
  %v22 = vld [vmem:[%s1 + $0x40] sm:$0xff]
  %v23 = vld [vmem:[%s1 + $0x48] sm:$0xff]
  %v24 = vld [vmem:[%s1 + $0x50] sm:$0xff]
  %v25 = vld [vmem:[%s1 + $0x58] sm:$0xff]
  %v26 = vld [vmem:[%s1 + $0x60] sm:$0xff]
  %v27 = vld [vmem:[%s1 + $0x68] sm:$0xff]
  %v28 = vld [vmem:[%s1 + $0x70] sm:$0x1]
  %v29 = vld [vmem:[%s2] sm:$0xff]
  %v30 = vld [vmem:[%s2 + $0x8] sm:$0xff]
  %v31 = vld [vmem:[%s2 + $0x10] sm:$0xff]
  %v32 = vld [vmem:[%s2 + $0x18] sm:$0xff]
  %v33 = vld [vmem:[%s2 + $0x20] sm:$0xff]
  %v34 = vld [vmem:[%s2 + $0x28] sm:$0xff]
  %v35 = vld [vmem:[%s2 + $0x30] sm:$0xff]
  %v36 = vld [vmem:[%s2 + $0x38] sm:$0xff]
  %v37 = vld [vmem:[%s2 + $0x40] sm:$0xff]
  %v38 = vld [vmem:[%s2 + $0x48] sm:$0xff]
  %v39 = vld [vmem:[%s2 + $0x50] sm:$0xff]
  %v40 = vld [vmem:[%s2 + $0x58] sm:$0xff]
  %v41 = vld [vmem:[%s2 + $0x60] sm:$0xff]
  %v42 = vld [vmem:[%s2 + $0x68] sm:$0xff]
  %v43 = vld [vmem:[%s2 + $0x70] sm:$0xff]
  %v44 = vld [vmem:[%s2 + $0x78] sm:$0xff]
  %v45 = vld [vmem:[%s2 + $0x80] sm:$0xff]
  %v46 = vld [vmem:[%s2 + $0x88] sm:$0xff]
  %v47 = vld [vmem:[%s2 + $0x90] sm:$0xff]
  %v48 = vld [vmem:[%s2 + $0x98] sm:$0xff]
  %v49 = vld [vmem:[%s2 + $0xa0] sm:$0x1]
  %v50 = vld [vmem:[%s0] sm:$0xff]
  %v51 = vld [vmem:[%s0 + $0x8] sm:$0xff]
  %v52 = vld [vmem:[%s0 + $0x10] sm:$0xff]
  %v53 = vld [vmem:[%s0 + $0x18] sm:$0xff]
  %v54 = vld [vmem:[%s0 + $0x20] sm:$0xff]
  %v55 = vld [vmem:[%s0 + $0x28] sm:$0xff]
  %v56 = vld [vmem:[%s0 + $0x30] sm:$0xff]
  %v57 = vld [vmem:[%s0 + $0x38] sm:$0xff]
  %v58 = vlaneseq
  %v59 = vshrl.u32 %v58, 7
  %v60 = vsub.s32 0, %v59
  %v61 = vrot.slane %v19, %v60
  %vm62 = vcmask 64512
  %v64 = vsel %vm62, %v50, 0
  %v67 = vsel %vm62, %v51, 0
  %v70 = vsel %vm62, %v52, 0
  %v73 = vsel %vm62, %v53, 0
  %v76 = vsel %vm62, %v54, 0
  %v79 = vsel %vm62, %v55, 0
  %v82 = vsel %vm62, %v56, 0
  %v85 = vsel %vm62, %v57, 0
  %87 = vmatprep.subr.mxu0 0.0
  %88 = vmatpush1.msra.mxu0 %v14
  %89 = vmatprep.subr.mxu0 0.0
  %90 = vmatpush1.msra.mxu0 0.0
  %91 = vmatprep.subr.mxu0 0.0
  %92 = vmatpush1.msra.mxu0 0.0
  %93 = vmatprep.subr.mxu0 0.0
  %94 = vmatpush1.msra.mxu0 0.0
  %95 = vmatprep.subr.mxu0 0.0
  %96 = vmatpush1.msra.mxu0 0.0
  %97 = vmatprep.subr.mxu0 0.0
  %98 = vmatpush1.msra.mxu0 0.0
  %99 = vmatprep.subr.mxu0 0.0
  %100 = vmatpush1.msra.mxu0 0.0
  %101 = vmatprep.subr.mxu0 0.0
  %102 = vmatpush1.msra.mxu0 0.0
  %103 = vmatprep.subr.mxu0 0.0
  %104 = vmatpush1.msra.mxu0 0.0
  %105 = vmatprep.subr.mxu0 0.0
  %106 = vmatpush1.msra.mxu0 0.0
  %107 = vmatprep.subr.mxu0 0.0
  %108 = vmatpush1.msra.mxu0 0.0
  %109 = vmatprep.subr.mxu0 0.0
  %110 = vmatpush1.msra.mxu0 0.0
  %111 = vmatprep.subr.mxu0 0.0
  %112 = vmatpush1.msra.mxu0 0.0
  %113 = vmatprep.subr.mxu0 0.0
  %114 = vmatpush1.msra.mxu0 0.0
  %115 = vmatprep.subr.mxu0 0.0
  %116 = vmatpush1.msra.mxu0 0.0
  %117 = vmatprep.subr.mxu0 0.0
  %118 = vmatpush1.msra.mxu0 0.0
  %119 = vmatprep.subr.mxu0 0.0
  %120 = vmatpush1.msra.mxu0 0.0
  %121 = vmatprep.subr.mxu0 0.0
  %122 = vmatpush1.msra.mxu0 0.0
  %123 = vmatprep.subr.mxu0 0.0
  %124 = vmatpush1.msra.mxu0 0.0
  %125 = vmatprep.subr.mxu0 0.0
  %126 = vmatpush1.msra.mxu0 0.0
  %127 = vmatprep.subr.mxu0 0.0
  %128 = vmatpush1.msra.mxu0 0.0
  %129 = vmatprep.subr.mxu0 0.0
  %130 = vmatpush1.msra.mxu0 0.0
  %131 = vmatprep.subr.mxu0 0.0
  %132 = vmatpush1.msra.mxu0 0.0
  %133 = vmatprep.subr.mxu0 0.0
  %134 = vmatpush1.msra.mxu0 0.0
  %135 = vmatprep.subr.mxu0 0.0
  %136 = vmatpush1.msra.mxu0 0.0
  %137 = vmatprep.subr.mxu0 0.0
  %138 = vmatpush1.msra.mxu0 0.0
  %139 = vmatprep.subr.mxu0 0.0
  %140 = vmatpush1.msra.mxu0 0.0
  %141 = vmatprep.subr.mxu0 0.0
  %142 = vmatpush1.msra.mxu0 0.0
  %143 = vmatprep.subr.mxu0 0.0
  %144 = vmatpush1.msra.mxu0 0.0
  %145 = vmatprep.subr.mxu0 0.0
  %146 = vmatpush1.msra.mxu0 0.0
  %147 = vmatprep.subr.mxu0 0.0
  %148 = vmatpush1.msra.mxu0 0.0
  %149 = vmatprep.subr.mxu0 0.0
  %150 = vmatpush1.msra.mxu0 0.0
  %151 = vmatprep.mubr.f32.mxu0 0.0
  %152 = vmatmul.mubr.f32.gmra.mrb[0].mxu0 %v64
  %v153 = vpop.f32.mrb[0].mxu0
  %v154 = vadd.f32 %v61, %v153
  %v155 = vpop.f32.mrb[0].mxu0
  %156 = vmatprep.mubr.f32.mxu0 0.0
  %157 = vmatmul.mubr.f32.gmra.mrb[0].mxu0 %v67
  %v158 = vpop.f32.mrb[0].mxu0
  %v159 = vadd.f32 %v61, %v158
  %v160 = vpop.f32.mrb[0].mxu0
  %161 = vmatprep.mubr.f32.mxu0 0.0
  %162 = vmatmul.mubr.f32.gmra.mrb[0].mxu0 %v70
  %v163 = vpop.f32.mrb[0].mxu0
  %v164 = vadd.f32 %v61, %v163
  %v165 = vpop.f32.mrb[0].mxu0
  %166 = vmatprep.mubr.f32.mxu0 0.0
  %167 = vmatmul.mubr.f32.gmra.mrb[0].mxu0 %v73
  %v168 = vpop.f32.mrb[0].mxu0
  %v169 = vadd.f32 %v61, %v168
  %v170 = vpop.f32.mrb[0].mxu0
  %171 = vmatprep.mubr.f32.mxu0 0.0
  %172 = vmatmul.mubr.f32.gmra.mrb[0].mxu0 %v76
  %v173 = vpop.f32.mrb[0].mxu0
  %v174 = vadd.f32 %v61, %v173
  %v175 = vpop.f32.mrb[0].mxu0
  %176 = vmatprep.mubr.f32.mxu0 0.0
  %177 = vmatmul.mubr.f32.gmra.mrb[0].mxu0 %v79
  %v178 = vpop.f32.mrb[0].mxu0
  %v179 = vadd.f32 %v61, %v178
  %v180 = vpop.f32.mrb[0].mxu0
  %181 = vmatprep.mubr.f32.mxu0 0.0
  %182 = vmatmul.mubr.f32.gmra.mrb[0].mxu0 %v82
  %v183 = vpop.f32.mrb[0].mxu0
  %v184 = vadd.f32 %v61, %v183
  %v185 = vpop.f32.mrb[0].mxu0
  %186 = vmatprep.mubr.f32.mxu0 0.0
  %187 = vmatmul.mubr.f32.gmra.mrb[0].mxu0 %v85
  %v188 = vpop.f32.mrb[0].mxu0
  %v189 = vadd.f32 %v61, %v188
  %v190 = vpop.f32.mrb[0].mxu0
  %191 = vdwg.mxu0
  %vm192 = vcmask 261120
  %v194 = vsel %vm192, 0.0, 0
  %196 = vmatprep.subr.mxu0 0.0
  %197 = vmatpush1.msra.mxu0 %v15
  %198 = vmatprep.subr.mxu0 0.0
  %199 = vmatpush1.msra.mxu0 %v16
  %200 = vmatprep.subr.mxu0 0.0
  %201 = vmatpush1.msra.mxu0 %v17
  %202 = vmatprep.subr.mxu0 0.0
  %203 = vmatpush1.msra.mxu0 %v18
  %204 = vmatprep.subr.mxu0 0.0
  %205 = vmatpush1.msra.mxu0 0.0
  %206 = vmatprep.subr.mxu0 0.0
  %207 = vmatpush1.msra.mxu0 0.0
  %208 = vmatprep.subr.mxu0 0.0
  %209 = vmatpush1.msra.mxu0 0.0
  %210 = vmatprep.subr.mxu0 0.0
  %211 = vmatpush1.msra.mxu0 0.0
  %212 = vmatprep.subr.mxu0 0.0
  %213 = vmatpush1.msra.mxu0 0.0
  %214 = vmatprep.subr.mxu0 0.0
  %215 = vmatpush1.msra.mxu0 0.0
  %216 = vmatprep.subr.mxu0 0.0
  %217 = vmatpush1.msra.mxu0 0.0
  %218 = vmatprep.subr.mxu0 0.0
  %219 = vmatpush1.msra.mxu0 0.0
  %220 = vmatprep.subr.mxu0 0.0
  %221 = vmatpush1.msra.mxu0 0.0
  %222 = vmatprep.subr.mxu0 0.0
  %223 = vmatpush1.msra.mxu0 0.0
  %224 = vmatprep.subr.mxu0 0.0
  %225 = vmatpush1.msra.mxu0 0.0
  %226 = vmatprep.subr.mxu0 0.0
  %227 = vmatpush1.msra.mxu0 0.0
  %228 = vmatprep.subr.mxu0 0.0
  %229 = vmatpush1.msra.mxu0 0.0
  %230 = vmatprep.subr.mxu0 0.0
  %231 = vmatpush1.msra.mxu0 0.0
  %232 = vmatprep.subr.mxu0 0.0
  %233 = vmatpush1.msra.mxu0 0.0
  %234 = vmatprep.subr.mxu0 0.0
  %235 = vmatpush1.msra.mxu0 0.0
  %236 = vmatprep.subr.mxu0 0.0
  %237 = vmatpush1.msra.mxu0 0.0
  %238 = vmatprep.subr.mxu0 0.0
  %239 = vmatpush1.msra.mxu0 0.0
  %240 = vmatprep.subr.mxu0 0.0
  %241 = vmatpush1.msra.mxu0 0.0
  %242 = vmatprep.subr.mxu0 0.0
  %243 = vmatpush1.msra.mxu0 0.0
  %244 = vmatprep.subr.mxu0 0.0
  %245 = vmatpush1.msra.mxu0 0.0
  %246 = vmatprep.subr.mxu0 0.0
  %247 = vmatpush1.msra.mxu0 0.0
  %248 = vmatprep.subr.mxu0 0.0
  %249 = vmatpush1.msra.mxu0 0.0
  %250 = vmatprep.subr.mxu0 0.0
  %251 = vmatpush1.msra.mxu0 0.0
  %252 = vmatprep.subr.mxu0 0.0
  %253 = vmatpush1.msra.mxu0 0.0
  %254 = vmatprep.subr.mxu0 0.0
  %255 = vmatpush1.msra.mxu0 0.0
  %256 = vmatprep.subr.mxu0 0.0
  %257 = vmatpush1.msra.mxu0 0.0
  %258 = vmatprep.subr.mxu0 0.0
  %259 = vmatpush1.msra.mxu0 0.0
  %260 = vmatprep.mubr.f32.mxu0 0.0
  %261 = vmatmul.mubr.f32.gmra.mrb[0].mxu0 %v194
  %v262 = vpop.f32.mrb[0].mxu0
  %v263 = vadd.f32 0.0, %v262
  %v264 = vpop.f32.mrb[0].mxu0
  %265 = vdwg.mxu0
  %v266 = vadd.f32 %v154, %v263
  %v267 = vxor.u32 %v266, 2147483648
  %v268 = vmul.f32 %v267, 1.442695
  %v269 = vpow.pop %v268
  %v270 = vadd.f32 %v269, 1.0
  %v271 = vrcp.pop %v270
  %v272 = vmul.f32 1.0, %v271
  %v273 = vtanh.pop %v266
  %v274 = vmul.f32 %v272, 0.0
  %276 = vrot.lane.b32.xlu0 %v273, 32
  %v277 = vpop.permute.xlu0 %276
  %v279 = vmul.f32 %v272, %v277
  %281 = vrot.lane.b32.xlu0 %v279, 32
  %v282 = vpop.permute.xlu0 %281
  %v284 = vadd.f32 %v274, %v282
  %v285 = vtanh.pop %v284
  %287 = vrot.lane.b32.xlu0 %v285, 32
  %v288 = vpop.permute.xlu0 %287
  %v290 = vmul.f32 %v272, %v288
  %292 = vrot.lane.b32.xlu0 %v290, 64
  %v293 = vpop.permute.xlu0 %292
  %v294 = vsel %vm192, %v293, 0
  %296 = vmatprep.subr.mxu0 0.0
  %297 = vmatpush1.msra.mxu0 %v15
  %298 = vmatprep.subr.mxu0 0.0
  %299 = vmatpush1.msra.mxu0 %v16
  %300 = vmatprep.subr.mxu0 0.0
  %301 = vmatpush1.msra.mxu0 %v17
  %302 = vmatprep.subr.mxu0 0.0
  %303 = vmatpush1.msra.mxu0 %v18
  %304 = vmatprep.subr.mxu0 0.0
  %305 = vmatpush1.msra.mxu0 0.0
  %306 = vmatprep.subr.mxu0 0.0
  %307 = vmatpush1.msra.mxu0 0.0
  %308 = vmatprep.subr.mxu0 0.0
  %309 = vmatpush1.msra.mxu0 0.0
  %310 = vmatprep.subr.mxu0 0.0
  %311 = vmatpush1.msra.mxu0 0.0
  %312 = vmatprep.subr.mxu0 0.0
  %313 = vmatpush1.msra.mxu0 0.0
  %314 = vmatprep.subr.mxu0 0.0
  %315 = vmatpush1.msra.mxu0 0.0
  %316 = vmatprep.subr.mxu0 0.0
  %317 = vmatpush1.msra.mxu0 0.0
  %318 = vmatprep.subr.mxu0 0.0
  %319 = vmatpush1.msra.mxu0 0.0
  %320 = vmatprep.subr.mxu0 0.0
  %321 = vmatpush1.msra.mxu0 0.0
  %322 = vmatprep.subr.mxu0 0.0
  %323 = vmatpush1.msra.mxu0 0.0
  %324 = vmatprep.subr.mxu0 0.0
  %325 = vmatpush1.msra.mxu0 0.0
  %326 = vmatprep.subr.mxu0 0.0
  %327 = vmatpush1.msra.mxu0 0.0
  %328 = vmatprep.subr.mxu0 0.0
  %329 = vmatpush1.msra.mxu0 0.0
  %330 = vmatprep.subr.mxu0 0.0
  %331 = vmatpush1.msra.mxu0 0.0
  %332 = vmatprep.subr.mxu0 0.0
  %333 = vmatpush1.msra.mxu0 0.0
  %334 = vmatprep.subr.mxu0 0.0
  %335 = vmatpush1.msra.mxu0 0.0
  %336 = vmatprep.subr.mxu0 0.0
  %337 = vmatpush1.msra.mxu0 0.0
  %338 = vmatprep.subr.mxu0 0.0
  %339 = vmatpush1.msra.mxu0 0.0
  %340 = vmatprep.subr.mxu0 0.0
  %341 = vmatpush1.msra.mxu0 0.0
  %342 = vmatprep.subr.mxu0 0.0
  %343 = vmatpush1.msra.mxu0 0.0
  %344 = vmatprep.subr.mxu0 0.0
  %345 = vmatpush1.msra.mxu0 0.0
  %346 = vmatprep.subr.mxu0 0.0
  %347 = vmatpush1.msra.mxu0 0.0
  %348 = vmatprep.subr.mxu0 0.0
  %349 = vmatpush1.msra.mxu0 0.0
  %350 = vmatprep.subr.mxu0 0.0
  %351 = vmatpush1.msra.mxu0 0.0
  %352 = vmatprep.subr.mxu0 0.0
  %353 = vmatpush1.msra.mxu0 0.0
  %354 = vmatprep.subr.mxu0 0.0
  %355 = vmatpush1.msra.mxu0 0.0
  %356 = vmatprep.subr.mxu0 0.0
  %357 = vmatpush1.msra.mxu0 0.0
  %358 = vmatprep.subr.mxu0 0.0
  %359 = vmatpush1.msra.mxu0 0.0
  %360 = vmatprep.mubr.f32.mxu0 0.0
  %361 = vmatmul.mubr.f32.gmra.mrb[0].mxu0 %v294
  %v362 = vpop.f32.mrb[0].mxu0
  %v363 = vadd.f32 0.0, %v362
  %v364 = vpop.f32.mrb[0].mxu0
  %365 = vdwg.mxu0
  %v366 = vadd.f32 %v159, %v363
  %v367 = vxor.u32 %v366, 2147483648
  %v368 = vmul.f32 %v367, 1.442695
  %v369 = vpow.pop %v368
  %v370 = vadd.f32 %v369, 1.0
  %v371 = vrcp.pop %v370
  %v372 = vmul.f32 1.0, %v371
  %v373 = vtanh.pop %v366
  %v374 = vmul.f32 %v372, %v284
  %376 = vrot.lane.b32.xlu0 %v373, 32
  %v377 = vpop.permute.xlu0 %376
  %v379 = vmul.f32 %v372, %v377
  %381 = vrot.lane.b32.xlu0 %v379, 32
  %v382 = vpop.permute.xlu0 %381
  %v384 = vadd.f32 %v374, %v382
  %v385 = vtanh.pop %v384
  %387 = vrot.lane.b32.xlu0 %v385, 32
  %v388 = vpop.permute.xlu0 %387
  %v390 = vmul.f32 %v372, %v388
  %392 = vrot.lane.b32.xlu0 %v390, 64
  %v393 = vpop.permute.xlu0 %392
  %v394 = vsel %vm192, %v393, 0
  %396 = vmatprep.subr.mxu0 0.0
  %397 = vmatpush1.msra.mxu0 %v15
  %398 = vmatprep.subr.mxu0 0.0
  %399 = vmatpush1.msra.mxu0 %v16
  %400 = vmatprep.subr.mxu0 0.0
  %401 = vmatpush1.msra.mxu0 %v17
  %402 = vmatprep.subr.mxu0 0.0
  %403 = vmatpush1.msra.mxu0 %v18
  %404 = vmatprep.subr.mxu0 0.0
  %405 = vmatpush1.msra.mxu0 0.0
  %406 = vmatprep.subr.mxu0 0.0
  %407 = vmatpush1.msra.mxu0 0.0
  %408 = vmatprep.subr.mxu0 0.0
  %409 = vmatpush1.msra.mxu0 0.0
  %410 = vmatprep.subr.mxu0 0.0
  %411 = vmatpush1.msra.mxu0 0.0
  %412 = vmatprep.subr.mxu0 0.0
  %413 = vmatpush1.msra.mxu0 0.0
  %414 = vmatprep.subr.mxu0 0.0
  %415 = vmatpush1.msra.mxu0 0.0
  %416 = vmatprep.subr.mxu0 0.0
  %417 = vmatpush1.msra.mxu0 0.0
  %418 = vmatprep.subr.mxu0 0.0
  %419 = vmatpush1.msra.mxu0 0.0
  %420 = vmatprep.subr.mxu0 0.0
  %421 = vmatpush1.msra.mxu0 0.0
  %422 = vmatprep.subr.mxu0 0.0
  %423 = vmatpush1.msra.mxu0 0.0
  %424 = vmatprep.subr.mxu0 0.0
  %425 = vmatpush1.msra.mxu0 0.0
  %426 = vmatprep.subr.mxu0 0.0
  %427 = vmatpush1.msra.mxu0 0.0
  %428 = vmatprep.subr.mxu0 0.0
  %429 = vmatpush1.msra.mxu0 0.0
  %430 = vmatprep.subr.mxu0 0.0
  %431 = vmatpush1.msra.mxu0 0.0
  %432 = vmatprep.subr.mxu0 0.0
  %433 = vmatpush1.msra.mxu0 0.0
  %434 = vmatprep.subr.mxu0 0.0
  %435 = vmatpush1.msra.mxu0 0.0
  %436 = vmatprep.subr.mxu0 0.0
  %437 = vmatpush1.msra.mxu0 0.0
  %438 = vmatprep.subr.mxu0 0.0
  %439 = vmatpush1.msra.mxu0 0.0
  %440 = vmatprep.subr.mxu0 0.0
  %441 = vmatpush1.msra.mxu0 0.0
  %442 = vmatprep.subr.mxu0 0.0
  %443 = vmatpush1.msra.mxu0 0.0
  %444 = vmatprep.subr.mxu0 0.0
  %445 = vmatpush1.msra.mxu0 0.0
  %446 = vmatprep.subr.mxu0 0.0
  %447 = vmatpush1.msra.mxu0 0.0
  %448 = vmatprep.subr.mxu0 0.0
  %449 = vmatpush1.msra.mxu0 0.0
  %450 = vmatprep.subr.mxu0 0.0
  %451 = vmatpush1.msra.mxu0 0.0
  %452 = vmatprep.subr.mxu0 0.0
  %453 = vmatpush1.msra.mxu0 0.0
  %454 = vmatprep.subr.mxu0 0.0
  %455 = vmatpush1.msra.mxu0 0.0
  %456 = vmatprep.subr.mxu0 0.0
  %457 = vmatpush1.msra.mxu0 0.0
  %458 = vmatprep.subr.mxu0 0.0
  %459 = vmatpush1.msra.mxu0 0.0
  %460 = vmatprep.mubr.f32.mxu0 0.0
  %461 = vmatmul.mubr.f32.gmra.mrb[0].mxu0 %v394
  %v462 = vpop.f32.mrb[0].mxu0
  %v463 = vadd.f32 0.0, %v462
  %v464 = vpop.f32.mrb[0].mxu0
  %465 = vdwg.mxu0
  %v466 = vadd.f32 %v164, %v463
  %v467 = vxor.u32 %v466, 2147483648
  %v468 = vmul.f32 %v467, 1.442695
  %v469 = vpow.pop %v468
  %v470 = vadd.f32 %v469, 1.0
  %v471 = vrcp.pop %v470
  %v472 = vmul.f32 1.0, %v471
  %v473 = vtanh.pop %v466
  %v474 = vmul.f32 %v472, %v384
  %476 = vrot.lane.b32.xlu0 %v473, 32
  %v477 = vpop.permute.xlu0 %476
  %v479 = vmul.f32 %v472, %v477
  %481 = vrot.lane.b32.xlu0 %v479, 32
  %v482 = vpop.permute.xlu0 %481
  %v484 = vadd.f32 %v474, %v482
  %v485 = vtanh.pop %v484
  %487 = vrot.lane.b32.xlu0 %v485, 32
  %v488 = vpop.permute.xlu0 %487
  %v490 = vmul.f32 %v472, %v488
  %492 = vrot.lane.b32.xlu0 %v490, 64
  %v493 = vpop.permute.xlu0 %492
  %v494 = vsel %vm192, %v493, 0
  %496 = vmatprep.subr.mxu0 0.0
  %497 = vmatpush1.msra.mxu0 %v15
  %498 = vmatprep.subr.mxu0 0.0
  %499 = vmatpush1.msra.mxu0 %v16
  %500 = vmatprep.subr.mxu0 0.0
  %501 = vmatpush1.msra.mxu0 %v17
  %502 = vmatprep.subr.mxu0 0.0
  %503 = vmatpush1.msra.mxu0 %v18
  %504 = vmatprep.subr.mxu0 0.0
  %505 = vmatpush1.msra.mxu0 0.0
  %506 = vmatprep.subr.mxu0 0.0
  %507 = vmatpush1.msra.mxu0 0.0
  %508 = vmatprep.subr.mxu0 0.0
  %509 = vmatpush1.msra.mxu0 0.0
  %510 = vmatprep.subr.mxu0 0.0
  %511 = vmatpush1.msra.mxu0 0.0
  %512 = vmatprep.subr.mxu0 0.0
  %513 = vmatpush1.msra.mxu0 0.0
  %514 = vmatprep.subr.mxu0 0.0
  %515 = vmatpush1.msra.mxu0 0.0
  %516 = vmatprep.subr.mxu0 0.0
  %517 = vmatpush1.msra.mxu0 0.0
  %518 = vmatprep.subr.mxu0 0.0
  %519 = vmatpush1.msra.mxu0 0.0
  %520 = vmatprep.subr.mxu0 0.0
  %521 = vmatpush1.msra.mxu0 0.0
  %522 = vmatprep.subr.mxu0 0.0
  %523 = vmatpush1.msra.mxu0 0.0
  %524 = vmatprep.subr.mxu0 0.0
  %525 = vmatpush1.msra.mxu0 0.0
  %526 = vmatprep.subr.mxu0 0.0
  %527 = vmatpush1.msra.mxu0 0.0
  %528 = vmatprep.subr.mxu0 0.0
  %529 = vmatpush1.msra.mxu0 0.0
  %530 = vmatprep.subr.mxu0 0.0
  %531 = vmatpush1.msra.mxu0 0.0
  %532 = vmatprep.subr.mxu0 0.0
  %533 = vmatpush1.msra.mxu0 0.0
  %534 = vmatprep.subr.mxu0 0.0
  %535 = vmatpush1.msra.mxu0 0.0
  %536 = vmatprep.subr.mxu0 0.0
  %537 = vmatpush1.msra.mxu0 0.0
  %538 = vmatprep.subr.mxu0 0.0
  %539 = vmatpush1.msra.mxu0 0.0
  %540 = vmatprep.subr.mxu0 0.0
  %541 = vmatpush1.msra.mxu0 0.0
  %542 = vmatprep.subr.mxu0 0.0
  %543 = vmatpush1.msra.mxu0 0.0
  %544 = vmatprep.subr.mxu0 0.0
  %545 = vmatpush1.msra.mxu0 0.0
  %546 = vmatprep.subr.mxu0 0.0
  %547 = vmatpush1.msra.mxu0 0.0
  %548 = vmatprep.subr.mxu0 0.0
  %549 = vmatpush1.msra.mxu0 0.0
  %550 = vmatprep.subr.mxu0 0.0
  %551 = vmatpush1.msra.mxu0 0.0
  %552 = vmatprep.subr.mxu0 0.0
  %553 = vmatpush1.msra.mxu0 0.0
  %554 = vmatprep.subr.mxu0 0.0
  %555 = vmatpush1.msra.mxu0 0.0
  %556 = vmatprep.subr.mxu0 0.0
  %557 = vmatpush1.msra.mxu0 0.0
  %558 = vmatprep.subr.mxu0 0.0
  %559 = vmatpush1.msra.mxu0 0.0
  %560 = vmatprep.mubr.f32.mxu0 0.0
  %561 = vmatmul.mubr.f32.gmra.mrb[0].mxu0 %v494
  %v562 = vpop.f32.mrb[0].mxu0
  %v563 = vadd.f32 0.0, %v562
  %v564 = vpop.f32.mrb[0].mxu0
  %565 = vdwg.mxu0
  %v566 = vadd.f32 %v169, %v563
  %v567 = vxor.u32 %v566, 2147483648
  %v568 = vmul.f32 %v567, 1.442695
  %v569 = vpow.pop %v568
  %v570 = vadd.f32 %v569, 1.0
  %v571 = vrcp.pop %v570
  %v572 = vmul.f32 1.0, %v571
  %v573 = vtanh.pop %v566
  %v574 = vmul.f32 %v572, %v484
  %576 = vrot.lane.b32.xlu0 %v573, 32
  %v577 = vpop.permute.xlu0 %576
  %v579 = vmul.f32 %v572, %v577
  %581 = vrot.lane.b32.xlu0 %v579, 32
  %v582 = vpop.permute.xlu0 %581
  %v584 = vadd.f32 %v574, %v582
  %v585 = vtanh.pop %v584
  %587 = vrot.lane.b32.xlu0 %v585, 32
  %v588 = vpop.permute.xlu0 %587
  %v590 = vmul.f32 %v572, %v588
  %592 = vrot.lane.b32.xlu0 %v590, 64
  %v593 = vpop.permute.xlu0 %592
  %v594 = vsel %vm192, %v593, 0
  %596 = vmatprep.subr.mxu0 0.0
  %597 = vmatpush1.msra.mxu0 %v15
  %598 = vmatprep.subr.mxu0 0.0
  %599 = vmatpush1.msra.mxu0 %v16
  %600 = vmatprep.subr.mxu0 0.0
  %601 = vmatpush1.msra.mxu0 %v17
  %602 = vmatprep.subr.mxu0 0.0
  %603 = vmatpush1.msra.mxu0 %v18
  %604 = vmatprep.subr.mxu0 0.0
  %605 = vmatpush1.msra.mxu0 0.0
  %606 = vmatprep.subr.mxu0 0.0
  %607 = vmatpush1.msra.mxu0 0.0
  %608 = vmatprep.subr.mxu0 0.0
  %609 = vmatpush1.msra.mxu0 0.0
  %610 = vmatprep.subr.mxu0 0.0
  %611 = vmatpush1.msra.mxu0 0.0
  %612 = vmatprep.subr.mxu0 0.0
  %613 = vmatpush1.msra.mxu0 0.0
  %614 = vmatprep.subr.mxu0 0.0
  %615 = vmatpush1.msra.mxu0 0.0
  %616 = vmatprep.subr.mxu0 0.0
  %617 = vmatpush1.msra.mxu0 0.0
  %618 = vmatprep.subr.mxu0 0.0
  %619 = vmatpush1.msra.mxu0 0.0
  %620 = vmatprep.subr.mxu0 0.0
  %621 = vmatpush1.msra.mxu0 0.0
  %622 = vmatprep.subr.mxu0 0.0
  %623 = vmatpush1.msra.mxu0 0.0
  %624 = vmatprep.subr.mxu0 0.0
  %625 = vmatpush1.msra.mxu0 0.0
  %626 = vmatprep.subr.mxu0 0.0
  %627 = vmatpush1.msra.mxu0 0.0
  %628 = vmatprep.subr.mxu0 0.0
  %629 = vmatpush1.msra.mxu0 0.0
  %630 = vmatprep.subr.mxu0 0.0
  %631 = vmatpush1.msra.mxu0 0.0
  %632 = vmatprep.subr.mxu0 0.0
  %633 = vmatpush1.msra.mxu0 0.0
  %634 = vmatprep.subr.mxu0 0.0
  %635 = vmatpush1.msra.mxu0 0.0
  %636 = vmatprep.subr.mxu0 0.0
  %637 = vmatpush1.msra.mxu0 0.0
  %638 = vmatprep.subr.mxu0 0.0
  %639 = vmatpush1.msra.mxu0 0.0
  %640 = vmatprep.subr.mxu0 0.0
  %641 = vmatpush1.msra.mxu0 0.0
  %642 = vmatprep.subr.mxu0 0.0
  %643 = vmatpush1.msra.mxu0 0.0
  %644 = vmatprep.subr.mxu0 0.0
  %645 = vmatpush1.msra.mxu0 0.0
  %646 = vmatprep.subr.mxu0 0.0
  %647 = vmatpush1.msra.mxu0 0.0
  %648 = vmatprep.subr.mxu0 0.0
  %649 = vmatpush1.msra.mxu0 0.0
  %650 = vmatprep.subr.mxu0 0.0
  %651 = vmatpush1.msra.mxu0 0.0
  %652 = vmatprep.subr.mxu0 0.0
  %653 = vmatpush1.msra.mxu0 0.0
  %654 = vmatprep.subr.mxu0 0.0
  %655 = vmatpush1.msra.mxu0 0.0
  %656 = vmatprep.subr.mxu0 0.0
  %657 = vmatpush1.msra.mxu0 0.0
  %658 = vmatprep.subr.mxu0 0.0
  %659 = vmatpush1.msra.mxu0 0.0
  %660 = vmatprep.mubr.f32.mxu0 0.0
  %661 = vmatmul.mubr.f32.gmra.mrb[0].mxu0 %v594
  %v662 = vpop.f32.mrb[0].mxu0
  %v663 = vadd.f32 0.0, %v662
  %v664 = vpop.f32.mrb[0].mxu0
  %665 = vdwg.mxu0
  %v666 = vadd.f32 %v174, %v663
  %v667 = vxor.u32 %v666, 2147483648
  %v668 = vmul.f32 %v667, 1.442695
  %v669 = vpow.pop %v668
  %v670 = vadd.f32 %v669, 1.0
  %v671 = vrcp.pop %v670
  %v672 = vmul.f32 1.0, %v671
  %v673 = vtanh.pop %v666
  %v674 = vmul.f32 %v672, %v584
  %676 = vrot.lane.b32.xlu0 %v673, 32
  %v677 = vpop.permute.xlu0 %676
  %v679 = vmul.f32 %v672, %v677
  %681 = vrot.lane.b32.xlu0 %v679, 32
  %v682 = vpop.permute.xlu0 %681
  %v684 = vadd.f32 %v674, %v682
  %v685 = vtanh.pop %v684
  %687 = vrot.lane.b32.xlu0 %v685, 32
  %v688 = vpop.permute.xlu0 %687
  %v690 = vmul.f32 %v672, %v688
  %692 = vrot.lane.b32.xlu0 %v690, 64
  %v693 = vpop.permute.xlu0 %692
  %v694 = vsel %vm192, %v693, 0
  %696 = vmatprep.subr.mxu0 0.0
  %697 = vmatpush1.msra.mxu0 %v15
  %698 = vmatprep.subr.mxu0 0.0
  %699 = vmatpush1.msra.mxu0 %v16
  %700 = vmatprep.subr.mxu0 0.0
  %701 = vmatpush1.msra.mxu0 %v17
  %702 = vmatprep.subr.mxu0 0.0
  %703 = vmatpush1.msra.mxu0 %v18
  %704 = vmatprep.subr.mxu0 0.0
  %705 = vmatpush1.msra.mxu0 0.0
  %706 = vmatprep.subr.mxu0 0.0
  %707 = vmatpush1.msra.mxu0 0.0
  %708 = vmatprep.subr.mxu0 0.0
  %709 = vmatpush1.msra.mxu0 0.0
  %710 = vmatprep.subr.mxu0 0.0
  %711 = vmatpush1.msra.mxu0 0.0
  %712 = vmatprep.subr.mxu0 0.0
  %713 = vmatpush1.msra.mxu0 0.0
  %714 = vmatprep.subr.mxu0 0.0
  %715 = vmatpush1.msra.mxu0 0.0
  %716 = vmatprep.subr.mxu0 0.0
  %717 = vmatpush1.msra.mxu0 0.0
  %718 = vmatprep.subr.mxu0 0.0
  %719 = vmatpush1.msra.mxu0 0.0
  %720 = vmatprep.subr.mxu0 0.0
  %721 = vmatpush1.msra.mxu0 0.0
  %722 = vmatprep.subr.mxu0 0.0
  %723 = vmatpush1.msra.mxu0 0.0
  %724 = vmatprep.subr.mxu0 0.0
  %725 = vmatpush1.msra.mxu0 0.0
  %726 = vmatprep.subr.mxu0 0.0
  %727 = vmatpush1.msra.mxu0 0.0
  %728 = vmatprep.subr.mxu0 0.0
  %729 = vmatpush1.msra.mxu0 0.0
  %730 = vmatprep.subr.mxu0 0.0
  %731 = vmatpush1.msra.mxu0 0.0
  %732 = vmatprep.subr.mxu0 0.0
  %733 = vmatpush1.msra.mxu0 0.0
  %734 = vmatprep.subr.mxu0 0.0
  %735 = vmatpush1.msra.mxu0 0.0
  %736 = vmatprep.subr.mxu0 0.0
  %737 = vmatpush1.msra.mxu0 0.0
  %738 = vmatprep.subr.mxu0 0.0
  %739 = vmatpush1.msra.mxu0 0.0
  %740 = vmatprep.subr.mxu0 0.0
  %741 = vmatpush1.msra.mxu0 0.0
  %742 = vmatprep.subr.mxu0 0.0
  %743 = vmatpush1.msra.mxu0 0.0
  %744 = vmatprep.subr.mxu0 0.0
  %745 = vmatpush1.msra.mxu0 0.0
  %746 = vmatprep.subr.mxu0 0.0
  %747 = vmatpush1.msra.mxu0 0.0
  %748 = vmatprep.subr.mxu0 0.0
  %749 = vmatpush1.msra.mxu0 0.0
  %750 = vmatprep.subr.mxu0 0.0
  %751 = vmatpush1.msra.mxu0 0.0
  %752 = vmatprep.subr.mxu0 0.0
  %753 = vmatpush1.msra.mxu0 0.0
  %754 = vmatprep.subr.mxu0 0.0
  %755 = vmatpush1.msra.mxu0 0.0
  %756 = vmatprep.subr.mxu0 0.0
  %757 = vmatpush1.msra.mxu0 0.0
  %758 = vmatprep.subr.mxu0 0.0
  %759 = vmatpush1.msra.mxu0 0.0
  %760 = vmatprep.mubr.f32.mxu0 0.0
  %761 = vmatmul.mubr.f32.gmra.mrb[0].mxu0 %v694
  %v762 = vpop.f32.mrb[0].mxu0
  %v763 = vadd.f32 0.0, %v762
  %v764 = vpop.f32.mrb[0].mxu0
  %765 = vdwg.mxu0
  %v766 = vadd.f32 %v179, %v763
  %v767 = vxor.u32 %v766, 2147483648
  %v768 = vmul.f32 %v767, 1.442695
  %v769 = vpow.pop %v768
  %v770 = vadd.f32 %v769, 1.0
  %v771 = vrcp.pop %v770
  %v772 = vmul.f32 1.0, %v771
  %v773 = vtanh.pop %v766
  %v774 = vmul.f32 %v772, %v684
  %776 = vrot.lane.b32.xlu0 %v773, 32
  %v777 = vpop.permute.xlu0 %776
  %v779 = vmul.f32 %v772, %v777
  %781 = vrot.lane.b32.xlu0 %v779, 32
  %v782 = vpop.permute.xlu0 %781
  %v784 = vadd.f32 %v774, %v782
  %v785 = vtanh.pop %v784
  %787 = vrot.lane.b32.xlu0 %v785, 32
  %v788 = vpop.permute.xlu0 %787
  %v790 = vmul.f32 %v772, %v788
  %792 = vrot.lane.b32.xlu0 %v790, 64
  %v793 = vpop.permute.xlu0 %792
  %v794 = vsel %vm192, %v793, 0
  %796 = vmatprep.subr.mxu0 0.0
  %797 = vmatpush1.msra.mxu0 %v15
  %798 = vmatprep.subr.mxu0 0.0
  %799 = vmatpush1.msra.mxu0 %v16
  %800 = vmatprep.subr.mxu0 0.0
  %801 = vmatpush1.msra.mxu0 %v17
  %802 = vmatprep.subr.mxu0 0.0
  %803 = vmatpush1.msra.mxu0 %v18
  %804 = vmatprep.subr.mxu0 0.0
  %805 = vmatpush1.msra.mxu0 0.0
  %806 = vmatprep.subr.mxu0 0.0
  %807 = vmatpush1.msra.mxu0 0.0
  %808 = vmatprep.subr.mxu0 0.0
  %809 = vmatpush1.msra.mxu0 0.0
  %810 = vmatprep.subr.mxu0 0.0
  %811 = vmatpush1.msra.mxu0 0.0
  %812 = vmatprep.subr.mxu0 0.0
  %813 = vmatpush1.msra.mxu0 0.0
  %814 = vmatprep.subr.mxu0 0.0
  %815 = vmatpush1.msra.mxu0 0.0
  %816 = vmatprep.subr.mxu0 0.0
  %817 = vmatpush1.msra.mxu0 0.0
  %818 = vmatprep.subr.mxu0 0.0
  %819 = vmatpush1.msra.mxu0 0.0
  %820 = vmatprep.subr.mxu0 0.0
  %821 = vmatpush1.msra.mxu0 0.0
  %822 = vmatprep.subr.mxu0 0.0
  %823 = vmatpush1.msra.mxu0 0.0
  %824 = vmatprep.subr.mxu0 0.0
  %825 = vmatpush1.msra.mxu0 0.0
  %826 = vmatprep.subr.mxu0 0.0
  %827 = vmatpush1.msra.mxu0 0.0
  %828 = vmatprep.subr.mxu0 0.0
  %829 = vmatpush1.msra.mxu0 0.0
  %830 = vmatprep.subr.mxu0 0.0
  %831 = vmatpush1.msra.mxu0 0.0
  %832 = vmatprep.subr.mxu0 0.0
  %833 = vmatpush1.msra.mxu0 0.0
  %834 = vmatprep.subr.mxu0 0.0
  %835 = vmatpush1.msra.mxu0 0.0
  %836 = vmatprep.subr.mxu0 0.0
  %837 = vmatpush1.msra.mxu0 0.0
  %838 = vmatprep.subr.mxu0 0.0
  %839 = vmatpush1.msra.mxu0 0.0
  %840 = vmatprep.subr.mxu0 0.0
  %841 = vmatpush1.msra.mxu0 0.0
  %842 = vmatprep.subr.mxu0 0.0
  %843 = vmatpush1.msra.mxu0 0.0
  %844 = vmatprep.subr.mxu0 0.0
  %845 = vmatpush1.msra.mxu0 0.0
  %846 = vmatprep.subr.mxu0 0.0
  %847 = vmatpush1.msra.mxu0 0.0
  %848 = vmatprep.subr.mxu0 0.0
  %849 = vmatpush1.msra.mxu0 0.0
  %850 = vmatprep.subr.mxu0 0.0
  %851 = vmatpush1.msra.mxu0 0.0
  %852 = vmatprep.subr.mxu0 0.0
  %853 = vmatpush1.msra.mxu0 0.0
  %854 = vmatprep.subr.mxu0 0.0
  %855 = vmatpush1.msra.mxu0 0.0
  %856 = vmatprep.subr.mxu0 0.0
  %857 = vmatpush1.msra.mxu0 0.0
  %858 = vmatprep.subr.mxu0 0.0
  %859 = vmatpush1.msra.mxu0 0.0
  %860 = vmatprep.mubr.f32.mxu0 0.0
  %861 = vmatmul.mubr.f32.gmra.mrb[0].mxu0 %v794
  %v862 = vpop.f32.mrb[0].mxu0
  %v863 = vadd.f32 0.0, %v862
  %v864 = vpop.f32.mrb[0].mxu0
  %865 = vdwg.mxu0
  %v866 = vadd.f32 %v184, %v863
  %v867 = vxor.u32 %v866, 2147483648
  %v868 = vmul.f32 %v867, 1.442695
  %v869 = vpow.pop %v868
  %v870 = vadd.f32 %v869, 1.0
  %v871 = vrcp.pop %v870
  %v872 = vmul.f32 1.0, %v871
  %v873 = vtanh.pop %v866
  %v874 = vmul.f32 %v872, %v784
  %876 = vrot.lane.b32.xlu0 %v873, 32
  %v877 = vpop.permute.xlu0 %876
  %v879 = vmul.f32 %v872, %v877
  %881 = vrot.lane.b32.xlu0 %v879, 32
  %v882 = vpop.permute.xlu0 %881
  %v884 = vadd.f32 %v874, %v882
  %v885 = vtanh.pop %v884
  %887 = vrot.lane.b32.xlu0 %v885, 32
  %v888 = vpop.permute.xlu0 %887
  %v890 = vmul.f32 %v872, %v888
  %892 = vrot.lane.b32.xlu0 %v890, 64
  %v893 = vpop.permute.xlu0 %892
  %v894 = vsel %vm192, %v893, 0
  %896 = vmatprep.subr.mxu0 0.0
  %897 = vmatpush1.msra.mxu0 %v15
  %898 = vmatprep.subr.mxu0 0.0
  %899 = vmatpush1.msra.mxu0 %v16
  %900 = vmatprep.subr.mxu0 0.0
  %901 = vmatpush1.msra.mxu0 %v17
  %902 = vmatprep.subr.mxu0 0.0
  %903 = vmatpush1.msra.mxu0 %v18
  %904 = vmatprep.subr.mxu0 0.0
  %905 = vmatpush1.msra.mxu0 0.0
  %906 = vmatprep.subr.mxu0 0.0
  %907 = vmatpush1.msra.mxu0 0.0
  %908 = vmatprep.subr.mxu0 0.0
  %909 = vmatpush1.msra.mxu0 0.0
  %910 = vmatprep.subr.mxu0 0.0
  %911 = vmatpush1.msra.mxu0 0.0
  %912 = vmatprep.subr.mxu0 0.0
  %913 = vmatpush1.msra.mxu0 0.0
  %914 = vmatprep.subr.mxu0 0.0
  %915 = vmatpush1.msra.mxu0 0.0
  %916 = vmatprep.subr.mxu0 0.0
  %917 = vmatpush1.msra.mxu0 0.0
  %918 = vmatprep.subr.mxu0 0.0
  %919 = vmatpush1.msra.mxu0 0.0
  %920 = vmatprep.subr.mxu0 0.0
  %921 = vmatpush1.msra.mxu0 0.0
  %922 = vmatprep.subr.mxu0 0.0
  %923 = vmatpush1.msra.mxu0 0.0
  %924 = vmatprep.subr.mxu0 0.0
  %925 = vmatpush1.msra.mxu0 0.0
  %926 = vmatprep.subr.mxu0 0.0
  %927 = vmatpush1.msra.mxu0 0.0
  %928 = vmatprep.subr.mxu0 0.0
  %929 = vmatpush1.msra.mxu0 0.0
  %930 = vmatprep.subr.mxu0 0.0
  %931 = vmatpush1.msra.mxu0 0.0
  %932 = vmatprep.subr.mxu0 0.0
  %933 = vmatpush1.msra.mxu0 0.0
  %934 = vmatprep.subr.mxu0 0.0
  %935 = vmatpush1.msra.mxu0 0.0
  %936 = vmatprep.subr.mxu0 0.0
  %937 = vmatpush1.msra.mxu0 0.0
  %938 = vmatprep.subr.mxu0 0.0
  %939 = vmatpush1.msra.mxu0 0.0
  %940 = vmatprep.subr.mxu0 0.0
  %941 = vmatpush1.msra.mxu0 0.0
  %942 = vmatprep.subr.mxu0 0.0
  %943 = vmatpush1.msra.mxu0 0.0
  %944 = vmatprep.subr.mxu0 0.0
  %945 = vmatpush1.msra.mxu0 0.0
  %946 = vmatprep.subr.mxu0 0.0
  %947 = vmatpush1.msra.mxu0 0.0
  %948 = vmatprep.subr.mxu0 0.0
  %949 = vmatpush1.msra.mxu0 0.0
  %950 = vmatprep.subr.mxu0 0.0
  %951 = vmatpush1.msra.mxu0 0.0
  %952 = vmatprep.subr.mxu0 0.0
  %953 = vmatpush1.msra.mxu0 0.0
  %954 = vmatprep.subr.mxu0 0.0
  %955 = vmatpush1.msra.mxu0 0.0
  %956 = vmatprep.subr.mxu0 0.0
  %957 = vmatpush1.msra.mxu0 0.0
  %958 = vmatprep.subr.mxu0 0.0
  %959 = vmatpush1.msra.mxu0 0.0
  %960 = vmatprep.mubr.f32.mxu0 0.0
  %961 = vmatmul.mubr.f32.gmra.mrb[0].mxu0 %v894
  %v962 = vpop.f32.mrb[0].mxu0
  %v963 = vadd.f32 0.0, %v962
  %v964 = vpop.f32.mrb[0].mxu0
  %965 = vdwg.mxu0
  %v966 = vadd.f32 %v189, %v963
  %v967 = vxor.u32 %v966, 2147483648
  %v968 = vmul.f32 %v967, 1.442695
  %v969 = vpow.pop %v968
  %v970 = vadd.f32 %v969, 1.0
  %v971 = vrcp.pop %v970
  %v972 = vmul.f32 1.0, %v971
  %v973 = vtanh.pop %v966
  %v974 = vmul.f32 %v972, %v884
  %976 = vrot.lane.b32.xlu0 %v973, 32
  %v977 = vpop.permute.xlu0 %976
  %v979 = vmul.f32 %v972, %v977
  %981 = vrot.lane.b32.xlu0 %v979, 32
  %v982 = vpop.permute.xlu0 %981
  %v984 = vadd.f32 %v974, %v982
  %v985 = vtanh.pop %v984
  %987 = vrot.lane.b32.xlu0 %v985, 32
  %v988 = vpop.permute.xlu0 %987
  %v990 = vmul.f32 %v972, %v988
  %v991 = vlaneseq
  %v992 = vshrl.u32 %v991, 7
  %v993 = vsub.s32 0, %v992
  %v994 = vrot.slane %v28, %v993
  %996 = vrot.lane.b32.xlu0 %v990, 64
  %v997 = vpop.permute.xlu0 %996
  %v998 = vsel %vm192, %v997, 0
  %1000 = vmatprep.subr.mxu0 0.0
  %1001 = vmatpush1.msra.mxu0 %v20
  %1002 = vmatprep.subr.mxu0 0.0
  %1003 = vmatpush1.msra.mxu0 %v21
  %1004 = vmatprep.subr.mxu0 0.0
  %1005 = vmatpush1.msra.mxu0 %v22
  %1006 = vmatprep.subr.mxu0 0.0
  %1007 = vmatpush1.msra.mxu0 %v23
  %1008 = vmatprep.subr.mxu0 0.0
  %1009 = vmatpush1.msra.mxu0 0.0
  %1010 = vmatprep.subr.mxu0 0.0
  %1011 = vmatpush1.msra.mxu0 0.0
  %1012 = vmatprep.subr.mxu0 0.0
  %1013 = vmatpush1.msra.mxu0 0.0
  %1014 = vmatprep.subr.mxu0 0.0
  %1015 = vmatpush1.msra.mxu0 0.0
  %1016 = vmatprep.subr.mxu0 0.0
  %1017 = vmatpush1.msra.mxu0 0.0
  %1018 = vmatprep.subr.mxu0 0.0
  %1019 = vmatpush1.msra.mxu0 0.0
  %1020 = vmatprep.subr.mxu0 0.0
  %1021 = vmatpush1.msra.mxu0 0.0
  %1022 = vmatprep.subr.mxu0 0.0
  %1023 = vmatpush1.msra.mxu0 0.0
  %1024 = vmatprep.subr.mxu0 0.0
  %1025 = vmatpush1.msra.mxu0 0.0
  %1026 = vmatprep.subr.mxu0 0.0
  %1027 = vmatpush1.msra.mxu0 0.0
  %1028 = vmatprep.subr.mxu0 0.0
  %1029 = vmatpush1.msra.mxu0 0.0
  %1030 = vmatprep.subr.mxu0 0.0
  %1031 = vmatpush1.msra.mxu0 0.0
  %1032 = vmatprep.subr.mxu0 0.0
  %1033 = vmatpush1.msra.mxu0 0.0
  %1034 = vmatprep.subr.mxu0 0.0
  %1035 = vmatpush1.msra.mxu0 0.0
  %1036 = vmatprep.subr.mxu0 0.0
  %1037 = vmatpush1.msra.mxu0 0.0
  %1038 = vmatprep.subr.mxu0 0.0
  %1039 = vmatpush1.msra.mxu0 0.0
  %1040 = vmatprep.subr.mxu0 0.0
  %1041 = vmatpush1.msra.mxu0 0.0
  %1042 = vmatprep.subr.mxu0 0.0
  %1043 = vmatpush1.msra.mxu0 0.0
  %1044 = vmatprep.subr.mxu0 0.0
  %1045 = vmatpush1.msra.mxu0 0.0
  %1046 = vmatprep.subr.mxu0 0.0
  %1047 = vmatpush1.msra.mxu0 0.0
  %1048 = vmatprep.subr.mxu0 0.0
  %1049 = vmatpush1.msra.mxu0 0.0
  %1050 = vmatprep.subr.mxu0 0.0
  %1051 = vmatpush1.msra.mxu0 0.0
  %1052 = vmatprep.subr.mxu0 0.0
  %1053 = vmatpush1.msra.mxu0 0.0
  %1054 = vmatprep.subr.mxu0 0.0
  %1055 = vmatpush1.msra.mxu0 0.0
  %1056 = vmatprep.subr.mxu0 0.0
  %1057 = vmatpush1.msra.mxu0 0.0
  %1058 = vmatprep.subr.mxu0 0.0
  %1059 = vmatpush1.msra.mxu0 0.0
  %1060 = vmatprep.subr.mxu0 0.0
  %1061 = vmatpush1.msra.mxu0 0.0
  %1062 = vmatprep.subr.mxu0 0.0
  %1063 = vmatpush1.msra.mxu0 0.0
  %1064 = vmatprep.mubr.f32.mxu0 0.0
  %1065 = vmatmul.mubr.f32.gmra.mrb[0].mxu0 %v998
  %v1066 = vpop.f32.mrb[0].mxu0
  %v1067 = vadd.f32 %v994, %v1066
  %v1068 = vpop.f32.mrb[0].mxu0
  %1069 = vdwg.mxu0
  %1070 = vmatprep.subr.mxu0 0.0
  %1071 = vmatpush1.msra.mxu0 %v24
  %1072 = vmatprep.subr.mxu0 0.0
  %1073 = vmatpush1.msra.mxu0 %v25
  %1074 = vmatprep.subr.mxu0 0.0
  %1075 = vmatpush1.msra.mxu0 %v26
  %1076 = vmatprep.subr.mxu0 0.0
  %1077 = vmatpush1.msra.mxu0 %v27
  %1078 = vmatprep.subr.mxu0 0.0
  %1079 = vmatpush1.msra.mxu0 0.0
  %1080 = vmatprep.subr.mxu0 0.0
  %1081 = vmatpush1.msra.mxu0 0.0
  %1082 = vmatprep.subr.mxu0 0.0
  %1083 = vmatpush1.msra.mxu0 0.0
  %1084 = vmatprep.subr.mxu0 0.0
  %1085 = vmatpush1.msra.mxu0 0.0
  %1086 = vmatprep.subr.mxu0 0.0
  %1087 = vmatpush1.msra.mxu0 0.0
  %1088 = vmatprep.subr.mxu0 0.0
  %1089 = vmatpush1.msra.mxu0 0.0
  %1090 = vmatprep.subr.mxu0 0.0
  %1091 = vmatpush1.msra.mxu0 0.0
  %1092 = vmatprep.subr.mxu0 0.0
  %1093 = vmatpush1.msra.mxu0 0.0
  %1094 = vmatprep.subr.mxu0 0.0
  %1095 = vmatpush1.msra.mxu0 0.0
  %1096 = vmatprep.subr.mxu0 0.0
  %1097 = vmatpush1.msra.mxu0 0.0
  %1098 = vmatprep.subr.mxu0 0.0
  %1099 = vmatpush1.msra.mxu0 0.0
  %1100 = vmatprep.subr.mxu0 0.0
  %1101 = vmatpush1.msra.mxu0 0.0
  %1102 = vmatprep.subr.mxu0 0.0
  %1103 = vmatpush1.msra.mxu0 0.0
  %1104 = vmatprep.subr.mxu0 0.0
  %1105 = vmatpush1.msra.mxu0 0.0
  %1106 = vmatprep.subr.mxu0 0.0
  %1107 = vmatpush1.msra.mxu0 0.0
  %1108 = vmatprep.subr.mxu0 0.0
  %1109 = vmatpush1.msra.mxu0 0.0
  %1110 = vmatprep.subr.mxu0 0.0
  %1111 = vmatpush1.msra.mxu0 0.0
  %1112 = vmatprep.subr.mxu0 0.0
  %1113 = vmatpush1.msra.mxu0 0.0
  %1114 = vmatprep.subr.mxu0 0.0
  %1115 = vmatpush1.msra.mxu0 0.0
  %1116 = vmatprep.subr.mxu0 0.0
  %1117 = vmatpush1.msra.mxu0 0.0
  %1118 = vmatprep.subr.mxu0 0.0
  %1119 = vmatpush1.msra.mxu0 0.0
  %1120 = vmatprep.subr.mxu0 0.0
  %1121 = vmatpush1.msra.mxu0 0.0
  %1122 = vmatprep.subr.mxu0 0.0
  %1123 = vmatpush1.msra.mxu0 0.0
  %1124 = vmatprep.subr.mxu0 0.0
  %1125 = vmatpush1.msra.mxu0 0.0
  %1126 = vmatprep.subr.mxu0 0.0
  %1127 = vmatpush1.msra.mxu0 0.0
  %1128 = vmatprep.subr.mxu0 0.0
  %1129 = vmatpush1.msra.mxu0 0.0
  %1130 = vmatprep.subr.mxu0 0.0
  %1131 = vmatpush1.msra.mxu0 0.0
  %1132 = vmatprep.subr.mxu0 0.0
  %1133 = vmatpush1.msra.mxu0 0.0
  %1134 = vmatprep.mubr.f32.mxu0 0.0
  %1135 = vmatmul.mubr.f32.gmra.mrb[0].mxu0 %v194
  %v1136 = vpop.f32.mrb[0].mxu0
  %v1137 = vadd.f32 0.0, %v1136
  %v1138 = vpop.f32.mrb[0].mxu0
  %1139 = vdwg.mxu0
  %v1140 = vadd.f32 %v1067, %v1137
  %v1141 = vxor.u32 %v1140, 2147483648
  %v1142 = vmul.f32 %v1141, 1.442695
  %v1143 = vpow.pop %v1142
  %v1144 = vadd.f32 %v1143, 1.0
  %v1145 = vrcp.pop %v1144
  %v1146 = vmul.f32 1.0, %v1145
  %v1147 = vtanh.pop %v1140
  %v1148 = vmul.f32 %v1146, 0.0
  %1150 = vrot.lane.b32.xlu0 %v1147, 32
  %v1151 = vpop.permute.xlu0 %1150
  %v1153 = vmul.f32 %v1146, %v1151
  %1155 = vrot.lane.b32.xlu0 %v1153, 32
  %v1156 = vpop.permute.xlu0 %1155
  %v1158 = vadd.f32 %v1148, %v1156
  %v1159 = vtanh.pop %v1158
  %1161 = vrot.lane.b32.xlu0 %v1159, 32
  %v1162 = vpop.permute.xlu0 %1161
  %v1164 = vmul.f32 %v1146, %v1162
  %1166 = vrot.lane.b32.xlu0 %v1164, 64
  %v1167 = vpop.permute.xlu0 %1166
  %v1168 = vsel %vm192, %v1167, 0
  %1170 = vmatprep.subr.mxu0 0.0
  %1171 = vmatpush1.msra.mxu0 %v24
  %1172 = vmatprep.subr.mxu0 0.0
  %1173 = vmatpush1.msra.mxu0 %v25
  %1174 = vmatprep.subr.mxu0 0.0
  %1175 = vmatpush1.msra.mxu0 %v26
  %1176 = vmatprep.subr.mxu0 0.0
  %1177 = vmatpush1.msra.mxu0 %v27
  %1178 = vmatprep.subr.mxu0 0.0
  %1179 = vmatpush1.msra.mxu0 0.0
  %1180 = vmatprep.subr.mxu0 0.0
  %1181 = vmatpush1.msra.mxu0 0.0
  %1182 = vmatprep.subr.mxu0 0.0
  %1183 = vmatpush1.msra.mxu0 0.0
  %1184 = vmatprep.subr.mxu0 0.0
  %1185 = vmatpush1.msra.mxu0 0.0
  %1186 = vmatprep.subr.mxu0 0.0
  %1187 = vmatpush1.msra.mxu0 0.0
  %1188 = vmatprep.subr.mxu0 0.0
  %1189 = vmatpush1.msra.mxu0 0.0
  %1190 = vmatprep.subr.mxu0 0.0
  %1191 = vmatpush1.msra.mxu0 0.0
  %1192 = vmatprep.subr.mxu0 0.0
  %1193 = vmatpush1.msra.mxu0 0.0
  %1194 = vmatprep.subr.mxu0 0.0
  %1195 = vmatpush1.msra.mxu0 0.0
  %1196 = vmatprep.subr.mxu0 0.0
  %1197 = vmatpush1.msra.mxu0 0.0
  %1198 = vmatprep.subr.mxu0 0.0
  %1199 = vmatpush1.msra.mxu0 0.0
  %1200 = vmatprep.subr.mxu0 0.0
  %1201 = vmatpush1.msra.mxu0 0.0
  %1202 = vmatprep.subr.mxu0 0.0
  %1203 = vmatpush1.msra.mxu0 0.0
  %1204 = vmatprep.subr.mxu0 0.0
  %1205 = vmatpush1.msra.mxu0 0.0
  %1206 = vmatprep.subr.mxu0 0.0
  %1207 = vmatpush1.msra.mxu0 0.0
  %1208 = vmatprep.subr.mxu0 0.0
  %1209 = vmatpush1.msra.mxu0 0.0
  %1210 = vmatprep.subr.mxu0 0.0
  %1211 = vmatpush1.msra.mxu0 0.0
  %1212 = vmatprep.subr.mxu0 0.0
  %1213 = vmatpush1.msra.mxu0 0.0
  %1214 = vmatprep.subr.mxu0 0.0
  %1215 = vmatpush1.msra.mxu0 0.0
  %1216 = vmatprep.subr.mxu0 0.0
  %1217 = vmatpush1.msra.mxu0 0.0
  %1218 = vmatprep.subr.mxu0 0.0
  %1219 = vmatpush1.msra.mxu0 0.0
  %1220 = vmatprep.subr.mxu0 0.0
  %1221 = vmatpush1.msra.mxu0 0.0
  %1222 = vmatprep.subr.mxu0 0.0
  %1223 = vmatpush1.msra.mxu0 0.0
  %1224 = vmatprep.subr.mxu0 0.0
  %1225 = vmatpush1.msra.mxu0 0.0
  %1226 = vmatprep.subr.mxu0 0.0
  %1227 = vmatpush1.msra.mxu0 0.0
  %1228 = vmatprep.subr.mxu0 0.0
  %1229 = vmatpush1.msra.mxu0 0.0
  %1230 = vmatprep.subr.mxu0 0.0
  %1231 = vmatpush1.msra.mxu0 0.0
  %1232 = vmatprep.subr.mxu0 0.0
  %1233 = vmatpush1.msra.mxu0 0.0
  %1234 = vmatprep.mubr.f32.mxu0 0.0
  %1235 = vmatmul.mubr.f32.gmra.mrb[0].mxu0 %v1168
  %v1236 = vpop.f32.mrb[0].mxu0
  %v1237 = vadd.f32 0.0, %v1236
  %v1238 = vpop.f32.mrb[0].mxu0
  %1239 = vdwg.mxu0
  %v1240 = vadd.f32 %v1067, %v1237
  %v1241 = vxor.u32 %v1240, 2147483648
  %v1242 = vmul.f32 %v1241, 1.442695
  %v1243 = vpow.pop %v1242
  %v1244 = vadd.f32 %v1243, 1.0
  %v1245 = vrcp.pop %v1244
  %v1246 = vmul.f32 1.0, %v1245
  %v1247 = vtanh.pop %v1240
  %v1248 = vmul.f32 %v1246, %v1158
  %1250 = vrot.lane.b32.xlu0 %v1247, 32
  %v1251 = vpop.permute.xlu0 %1250
  %v1253 = vmul.f32 %v1246, %v1251
  %1255 = vrot.lane.b32.xlu0 %v1253, 32
  %v1256 = vpop.permute.xlu0 %1255
  %v1258 = vadd.f32 %v1248, %v1256
  %v1259 = vtanh.pop %v1258
  %1261 = vrot.lane.b32.xlu0 %v1259, 32
  %v1262 = vpop.permute.xlu0 %1261
  %v1264 = vmul.f32 %v1246, %v1262
  %1266 = vrot.lane.b32.xlu0 %v1264, 64
  %v1267 = vpop.permute.xlu0 %1266
  %v1268 = vsel %vm192, %v1267, 0
  %1270 = vmatprep.subr.mxu0 0.0
  %1271 = vmatpush1.msra.mxu0 %v24
  %1272 = vmatprep.subr.mxu0 0.0
  %1273 = vmatpush1.msra.mxu0 %v25
  %1274 = vmatprep.subr.mxu0 0.0
  %1275 = vmatpush1.msra.mxu0 %v26
  %1276 = vmatprep.subr.mxu0 0.0
  %1277 = vmatpush1.msra.mxu0 %v27
  %1278 = vmatprep.subr.mxu0 0.0
  %1279 = vmatpush1.msra.mxu0 0.0
  %1280 = vmatprep.subr.mxu0 0.0
  %1281 = vmatpush1.msra.mxu0 0.0
  %1282 = vmatprep.subr.mxu0 0.0
  %1283 = vmatpush1.msra.mxu0 0.0
  %1284 = vmatprep.subr.mxu0 0.0
  %1285 = vmatpush1.msra.mxu0 0.0
  %1286 = vmatprep.subr.mxu0 0.0
  %1287 = vmatpush1.msra.mxu0 0.0
  %1288 = vmatprep.subr.mxu0 0.0
  %1289 = vmatpush1.msra.mxu0 0.0
  %1290 = vmatprep.subr.mxu0 0.0
  %1291 = vmatpush1.msra.mxu0 0.0
  %1292 = vmatprep.subr.mxu0 0.0
  %1293 = vmatpush1.msra.mxu0 0.0
  %1294 = vmatprep.subr.mxu0 0.0
  %1295 = vmatpush1.msra.mxu0 0.0
  %1296 = vmatprep.subr.mxu0 0.0
  %1297 = vmatpush1.msra.mxu0 0.0
  %1298 = vmatprep.subr.mxu0 0.0
  %1299 = vmatpush1.msra.mxu0 0.0
  %1300 = vmatprep.subr.mxu0 0.0
  %1301 = vmatpush1.msra.mxu0 0.0
  %1302 = vmatprep.subr.mxu0 0.0
  %1303 = vmatpush1.msra.mxu0 0.0
  %1304 = vmatprep.subr.mxu0 0.0
  %1305 = vmatpush1.msra.mxu0 0.0
  %1306 = vmatprep.subr.mxu0 0.0
  %1307 = vmatpush1.msra.mxu0 0.0
  %1308 = vmatprep.subr.mxu0 0.0
  %1309 = vmatpush1.msra.mxu0 0.0
  %1310 = vmatprep.subr.mxu0 0.0
  %1311 = vmatpush1.msra.mxu0 0.0
  %1312 = vmatprep.subr.mxu0 0.0
  %1313 = vmatpush1.msra.mxu0 0.0
  %1314 = vmatprep.subr.mxu0 0.0
  %1315 = vmatpush1.msra.mxu0 0.0
  %1316 = vmatprep.subr.mxu0 0.0
  %1317 = vmatpush1.msra.mxu0 0.0
  %1318 = vmatprep.subr.mxu0 0.0
  %1319 = vmatpush1.msra.mxu0 0.0
  %1320 = vmatprep.subr.mxu0 0.0
  %1321 = vmatpush1.msra.mxu0 0.0
  %1322 = vmatprep.subr.mxu0 0.0
  %1323 = vmatpush1.msra.mxu0 0.0
  %1324 = vmatprep.subr.mxu0 0.0
  %1325 = vmatpush1.msra.mxu0 0.0
  %1326 = vmatprep.subr.mxu0 0.0
  %1327 = vmatpush1.msra.mxu0 0.0
  %1328 = vmatprep.subr.mxu0 0.0
  %1329 = vmatpush1.msra.mxu0 0.0
  %1330 = vmatprep.subr.mxu0 0.0
  %1331 = vmatpush1.msra.mxu0 0.0
  %1332 = vmatprep.subr.mxu0 0.0
  %1333 = vmatpush1.msra.mxu0 0.0
  %1334 = vmatprep.mubr.f32.mxu0 0.0
  %1335 = vmatmul.mubr.f32.gmra.mrb[0].mxu0 %v1268
  %v1336 = vpop.f32.mrb[0].mxu0
  %v1337 = vadd.f32 0.0, %v1336
  %v1338 = vpop.f32.mrb[0].mxu0
  %1339 = vdwg.mxu0
  %v1340 = vadd.f32 %v1067, %v1337
  %v1341 = vxor.u32 %v1340, 2147483648
  %v1342 = vmul.f32 %v1341, 1.442695
  %v1343 = vpow.pop %v1342
  %v1344 = vadd.f32 %v1343, 1.0
  %v1345 = vrcp.pop %v1344
  %v1346 = vmul.f32 1.0, %v1345
  %v1347 = vtanh.pop %v1340
  %v1348 = vmul.f32 %v1346, %v1258
  %1350 = vrot.lane.b32.xlu0 %v1347, 32
  %v1351 = vpop.permute.xlu0 %1350
  %v1353 = vmul.f32 %v1346, %v1351
  %1355 = vrot.lane.b32.xlu0 %v1353, 32
  %v1356 = vpop.permute.xlu0 %1355
  %v1358 = vadd.f32 %v1348, %v1356
  %v1359 = vtanh.pop %v1358
  %1361 = vrot.lane.b32.xlu0 %v1359, 32
  %v1362 = vpop.permute.xlu0 %1361
  %v1364 = vmul.f32 %v1346, %v1362
  %1366 = vrot.lane.b32.xlu0 %v1364, 64
  %v1367 = vpop.permute.xlu0 %1366
  %v1368 = vsel %vm192, %v1367, 0
  %1370 = vmatprep.subr.mxu0 0.0
  %1371 = vmatpush1.msra.mxu0 %v24
  %1372 = vmatprep.subr.mxu0 0.0
  %1373 = vmatpush1.msra.mxu0 %v25
  %1374 = vmatprep.subr.mxu0 0.0
  %1375 = vmatpush1.msra.mxu0 %v26
  %1376 = vmatprep.subr.mxu0 0.0
  %1377 = vmatpush1.msra.mxu0 %v27
  %1378 = vmatprep.subr.mxu0 0.0
  %1379 = vmatpush1.msra.mxu0 0.0
  %1380 = vmatprep.subr.mxu0 0.0
  %1381 = vmatpush1.msra.mxu0 0.0
  %1382 = vmatprep.subr.mxu0 0.0
  %1383 = vmatpush1.msra.mxu0 0.0
  %1384 = vmatprep.subr.mxu0 0.0
  %1385 = vmatpush1.msra.mxu0 0.0
  %1386 = vmatprep.subr.mxu0 0.0
  %1387 = vmatpush1.msra.mxu0 0.0
  %1388 = vmatprep.subr.mxu0 0.0
  %1389 = vmatpush1.msra.mxu0 0.0
  %1390 = vmatprep.subr.mxu0 0.0
  %1391 = vmatpush1.msra.mxu0 0.0
  %1392 = vmatprep.subr.mxu0 0.0
  %1393 = vmatpush1.msra.mxu0 0.0
  %1394 = vmatprep.subr.mxu0 0.0
  %1395 = vmatpush1.msra.mxu0 0.0
  %1396 = vmatprep.subr.mxu0 0.0
  %1397 = vmatpush1.msra.mxu0 0.0
  %1398 = vmatprep.subr.mxu0 0.0
  %1399 = vmatpush1.msra.mxu0 0.0
  %1400 = vmatprep.subr.mxu0 0.0
  %1401 = vmatpush1.msra.mxu0 0.0
  %1402 = vmatprep.subr.mxu0 0.0
  %1403 = vmatpush1.msra.mxu0 0.0
  %1404 = vmatprep.subr.mxu0 0.0
  %1405 = vmatpush1.msra.mxu0 0.0
  %1406 = vmatprep.subr.mxu0 0.0
  %1407 = vmatpush1.msra.mxu0 0.0
  %1408 = vmatprep.subr.mxu0 0.0
  %1409 = vmatpush1.msra.mxu0 0.0
  %1410 = vmatprep.subr.mxu0 0.0
  %1411 = vmatpush1.msra.mxu0 0.0
  %1412 = vmatprep.subr.mxu0 0.0
  %1413 = vmatpush1.msra.mxu0 0.0
  %1414 = vmatprep.subr.mxu0 0.0
  %1415 = vmatpush1.msra.mxu0 0.0
  %1416 = vmatprep.subr.mxu0 0.0
  %1417 = vmatpush1.msra.mxu0 0.0
  %1418 = vmatprep.subr.mxu0 0.0
  %1419 = vmatpush1.msra.mxu0 0.0
  %1420 = vmatprep.subr.mxu0 0.0
  %1421 = vmatpush1.msra.mxu0 0.0
  %1422 = vmatprep.subr.mxu0 0.0
  %1423 = vmatpush1.msra.mxu0 0.0
  %1424 = vmatprep.subr.mxu0 0.0
  %1425 = vmatpush1.msra.mxu0 0.0
  %1426 = vmatprep.subr.mxu0 0.0
  %1427 = vmatpush1.msra.mxu0 0.0
  %1428 = vmatprep.subr.mxu0 0.0
  %1429 = vmatpush1.msra.mxu0 0.0
  %1430 = vmatprep.subr.mxu0 0.0
  %1431 = vmatpush1.msra.mxu0 0.0
  %1432 = vmatprep.subr.mxu0 0.0
  %1433 = vmatpush1.msra.mxu0 0.0
  %1434 = vmatprep.mubr.f32.mxu0 0.0
  %1435 = vmatmul.mubr.f32.gmra.mrb[0].mxu0 %v1368
  %v1436 = vpop.f32.mrb[0].mxu0
  %v1437 = vadd.f32 0.0, %v1436
  %v1438 = vpop.f32.mrb[0].mxu0
  %1439 = vdwg.mxu0
  %v1440 = vadd.f32 %v1067, %v1437
  %v1441 = vxor.u32 %v1440, 2147483648
  %v1442 = vmul.f32 %v1441, 1.442695
  %v1443 = vpow.pop %v1442
  %v1444 = vadd.f32 %v1443, 1.0
  %v1445 = vrcp.pop %v1444
  %v1446 = vmul.f32 1.0, %v1445
  %v1447 = vtanh.pop %v1440
  %v1448 = vmul.f32 %v1446, %v1358
  %1450 = vrot.lane.b32.xlu0 %v1447, 32
  %v1451 = vpop.permute.xlu0 %1450
  %v1453 = vmul.f32 %v1446, %v1451
  %1455 = vrot.lane.b32.xlu0 %v1453, 32
  %v1456 = vpop.permute.xlu0 %1455
  %v1458 = vadd.f32 %v1448, %v1456
  %v1459 = vtanh.pop %v1458
  %1461 = vrot.lane.b32.xlu0 %v1459, 32
  %v1462 = vpop.permute.xlu0 %1461
  %v1464 = vmul.f32 %v1446, %v1462
  %1466 = vrot.lane.b32.xlu0 %v1464, 64
  %v1467 = vpop.permute.xlu0 %1466
  %v1468 = vsel %vm192, %v1467, 0
  %1470 = vmatprep.subr.mxu0 0.0
  %1471 = vmatpush1.msra.mxu0 %v24
  %1472 = vmatprep.subr.mxu0 0.0
  %1473 = vmatpush1.msra.mxu0 %v25
  %1474 = vmatprep.subr.mxu0 0.0
  %1475 = vmatpush1.msra.mxu0 %v26
  %1476 = vmatprep.subr.mxu0 0.0
  %1477 = vmatpush1.msra.mxu0 %v27
  %1478 = vmatprep.subr.mxu0 0.0
  %1479 = vmatpush1.msra.mxu0 0.0
  %1480 = vmatprep.subr.mxu0 0.0
  %1481 = vmatpush1.msra.mxu0 0.0
  %1482 = vmatprep.subr.mxu0 0.0
  %1483 = vmatpush1.msra.mxu0 0.0
  %1484 = vmatprep.subr.mxu0 0.0
  %1485 = vmatpush1.msra.mxu0 0.0
  %1486 = vmatprep.subr.mxu0 0.0
  %1487 = vmatpush1.msra.mxu0 0.0
  %1488 = vmatprep.subr.mxu0 0.0
  %1489 = vmatpush1.msra.mxu0 0.0
  %1490 = vmatprep.subr.mxu0 0.0
  %1491 = vmatpush1.msra.mxu0 0.0
  %1492 = vmatprep.subr.mxu0 0.0
  %1493 = vmatpush1.msra.mxu0 0.0
  %1494 = vmatprep.subr.mxu0 0.0
  %1495 = vmatpush1.msra.mxu0 0.0
  %1496 = vmatprep.subr.mxu0 0.0
  %1497 = vmatpush1.msra.mxu0 0.0
  %1498 = vmatprep.subr.mxu0 0.0
  %1499 = vmatpush1.msra.mxu0 0.0
  %1500 = vmatprep.subr.mxu0 0.0
  %1501 = vmatpush1.msra.mxu0 0.0
  %1502 = vmatprep.subr.mxu0 0.0
  %1503 = vmatpush1.msra.mxu0 0.0
  %1504 = vmatprep.subr.mxu0 0.0
  %1505 = vmatpush1.msra.mxu0 0.0
  %1506 = vmatprep.subr.mxu0 0.0
  %1507 = vmatpush1.msra.mxu0 0.0
  %1508 = vmatprep.subr.mxu0 0.0
  %1509 = vmatpush1.msra.mxu0 0.0
  %1510 = vmatprep.subr.mxu0 0.0
  %1511 = vmatpush1.msra.mxu0 0.0
  %1512 = vmatprep.subr.mxu0 0.0
  %1513 = vmatpush1.msra.mxu0 0.0
  %1514 = vmatprep.subr.mxu0 0.0
  %1515 = vmatpush1.msra.mxu0 0.0
  %1516 = vmatprep.subr.mxu0 0.0
  %1517 = vmatpush1.msra.mxu0 0.0
  %1518 = vmatprep.subr.mxu0 0.0
  %1519 = vmatpush1.msra.mxu0 0.0
  %1520 = vmatprep.subr.mxu0 0.0
  %1521 = vmatpush1.msra.mxu0 0.0
  %1522 = vmatprep.subr.mxu0 0.0
  %1523 = vmatpush1.msra.mxu0 0.0
  %1524 = vmatprep.subr.mxu0 0.0
  %1525 = vmatpush1.msra.mxu0 0.0
  %1526 = vmatprep.subr.mxu0 0.0
  %1527 = vmatpush1.msra.mxu0 0.0
  %1528 = vmatprep.subr.mxu0 0.0
  %1529 = vmatpush1.msra.mxu0 0.0
  %1530 = vmatprep.subr.mxu0 0.0
  %1531 = vmatpush1.msra.mxu0 0.0
  %1532 = vmatprep.subr.mxu0 0.0
  %1533 = vmatpush1.msra.mxu0 0.0
  %1534 = vmatprep.mubr.f32.mxu0 0.0
  %1535 = vmatmul.mubr.f32.gmra.mrb[0].mxu0 %v1468
  %v1536 = vpop.f32.mrb[0].mxu0
  %v1537 = vadd.f32 0.0, %v1536
  %v1538 = vpop.f32.mrb[0].mxu0
  %1539 = vdwg.mxu0
  %v1540 = vadd.f32 %v1067, %v1537
  %v1541 = vxor.u32 %v1540, 2147483648
  %v1542 = vmul.f32 %v1541, 1.442695
  %v1543 = vpow.pop %v1542
  %v1544 = vadd.f32 %v1543, 1.0
  %v1545 = vrcp.pop %v1544
  %v1546 = vmul.f32 1.0, %v1545
  %v1547 = vtanh.pop %v1540
  %v1548 = vmul.f32 %v1546, %v1458
  %1550 = vrot.lane.b32.xlu0 %v1547, 32
  %v1551 = vpop.permute.xlu0 %1550
  %v1553 = vmul.f32 %v1546, %v1551
  %1555 = vrot.lane.b32.xlu0 %v1553, 32
  %v1556 = vpop.permute.xlu0 %1555
  %v1558 = vadd.f32 %v1548, %v1556
  %v1559 = vtanh.pop %v1558
  %1561 = vrot.lane.b32.xlu0 %v1559, 32
  %v1562 = vpop.permute.xlu0 %1561
  %v1564 = vmul.f32 %v1546, %v1562
  %1566 = vrot.lane.b32.xlu0 %v1264, 96
  %v1567 = vpop.permute.xlu0 %1566
  %1569 = vrot.lane.b32.xlu0 %v1464, 32
  %v1570 = vpop.permute.xlu0 %1569
  %1573 = vrot.lane.b32.xlu0 %v1564, 64
  %v1574 = vpop.permute.xlu0 %1573
  %v1575 = vsel %vm192, %v1167, %v1567
  %vm1576 = vcmask 523264
  %v1577 = vsel %vm1576, %v1575, %v1364
  %vm1578 = vcmask 785408
  %v1579 = vsel %vm1578, %v1577, %v1570
  %v1580 = vlaneseq
  %v1581 = vshrl.u32 %v1580, 7
  %v1582 = vsub.s32 0, %v1581
  %v1583 = vrot.slane %v49, %v1582
  %v1584 = vsel %vm192, %v1574, 0
  %1586 = vmatprep.subr.mxu0 0.0
  %1587 = vmatpush1.msra.mxu0 %v29
  %1588 = vmatprep.subr.mxu0 0.0
  %1589 = vmatpush1.msra.mxu0 %v30
  %1590 = vmatprep.subr.mxu0 0.0
  %1591 = vmatpush1.msra.mxu0 %v31
  %1592 = vmatprep.subr.mxu0 0.0
  %1593 = vmatpush1.msra.mxu0 %v32
  %1594 = vmatprep.subr.mxu0 0.0
  %1595 = vmatpush1.msra.mxu0 %v33
  %1596 = vmatprep.subr.mxu0 0.0
  %1597 = vmatpush1.msra.mxu0 %v34
  %1598 = vmatprep.subr.mxu0 0.0
  %1599 = vmatpush1.msra.mxu0 %v35
  %1600 = vmatprep.subr.mxu0 0.0
  %1601 = vmatpush1.msra.mxu0 %v36
  %1602 = vmatprep.subr.mxu0 0.0
  %1603 = vmatpush1.msra.mxu0 %v37
  %1604 = vmatprep.subr.mxu0 0.0
  %1605 = vmatpush1.msra.mxu0 %v38
  %1606 = vmatprep.subr.mxu0 0.0
  %1607 = vmatpush1.msra.mxu0 %v39
  %1608 = vmatprep.subr.mxu0 0.0
  %1609 = vmatpush1.msra.mxu0 %v40
  %1610 = vmatprep.subr.mxu0 0.0
  %1611 = vmatpush1.msra.mxu0 %v41
  %1612 = vmatprep.subr.mxu0 0.0
  %1613 = vmatpush1.msra.mxu0 %v42
  %1614 = vmatprep.subr.mxu0 0.0
  %1615 = vmatpush1.msra.mxu0 %v43
  %1616 = vmatprep.subr.mxu0 0.0
  %1617 = vmatpush1.msra.mxu0 %v44
  %1618 = vmatprep.subr.mxu0 0.0
  %1619 = vmatpush1.msra.mxu0 %v45
  %1620 = vmatprep.subr.mxu0 0.0
  %1621 = vmatpush1.msra.mxu0 %v46
  %1622 = vmatprep.subr.mxu0 0.0
  %1623 = vmatpush1.msra.mxu0 %v47
  %1624 = vmatprep.subr.mxu0 0.0
  %1625 = vmatpush1.msra.mxu0 %v48
  %1626 = vmatprep.subr.mxu0 0.0
  %1627 = vmatpush1.msra.mxu0 0.0
  %1628 = vmatprep.subr.mxu0 0.0
  %1629 = vmatpush1.msra.mxu0 0.0
  %1630 = vmatprep.subr.mxu0 0.0
  %1631 = vmatpush1.msra.mxu0 0.0
  %1632 = vmatprep.subr.mxu0 0.0
  %1633 = vmatpush1.msra.mxu0 0.0
  %1634 = vmatprep.subr.mxu0 0.0
  %1635 = vmatpush1.msra.mxu0 0.0
  %1636 = vmatprep.subr.mxu0 0.0
  %1637 = vmatpush1.msra.mxu0 0.0
  %1638 = vmatprep.subr.mxu0 0.0
  %1639 = vmatpush1.msra.mxu0 0.0
  %1640 = vmatprep.subr.mxu0 0.0
  %1641 = vmatpush1.msra.mxu0 0.0
  %1642 = vmatprep.subr.mxu0 0.0
  %1643 = vmatpush1.msra.mxu0 0.0
  %1644 = vmatprep.subr.mxu0 0.0
  %1645 = vmatpush1.msra.mxu0 0.0
  %1646 = vmatprep.subr.mxu0 0.0
  %1647 = vmatpush1.msra.mxu0 0.0
  %1648 = vmatprep.subr.mxu0 0.0
  %1649 = vmatpush1.msra.mxu0 0.0
  %1650 = vmatprep.mubr.f32.mxu0 %v1584
  %1651 = vmatmul.mubr.f32.gmra.mrb[0].mxu0 %v1579
  %v1652 = vpop.f32.mrb[0].mxu0
  %v1653 = vadd.f32 %v1583, %v1652
  %v1654 = vpop.f32.mrb[0].mxu0
  %1655 = vdwg.mxu0
  %v1656 = vmax.f32 %v1653, 0.0
  %vm1657 = vcmask 326656
  %1658 = vst.msk [vmem:[%s3] sm:$0xff] %vm1657, %v1656
  // Predicated region
  $region14: #{seq2seq_forward.1} parent=0 // pred_check
    _
  $region15: #{seq2seq_forward.1} parent=0 // pred_check_branch
    %1660 = sbr.rel (0) target = $region17
  $region16: #{seq2seq_forward.1} parent=0 // pred_region
    _
  $region17: #{seq2seq_forward.1} parent=0 // pred_fallthru
    _
  // Predicated region
  $region18: #{seq2seq_forward.1} parent=0 // pred_check
    _
  $region19: #{seq2seq_forward.1} parent=0 // pred_check_branch
    %1662 = sbr.rel (0) target = $region21
  $region20: #{seq2seq_forward.1} parent=0 // pred_region
    _
  $region21: #{seq2seq_forward.1} parent=0 // pred_fallthru
    _

</llo_original>
